<compile_context>
chip_gen: v7x
topology: tpu7x:2x2x1
jax: 0.10.0
libtpu: 0.0.40
codegen_flags: <defaults>
</compile_context>

<pallas_src>
import jax
import jax.numpy as jnp
from jax import lax
from jax.experimental import pallas as pl
from jax.experimental.pallas import tpu as pltpu


# --------------------------------------------------------------------------- #
# Kernels
# --------------------------------------------------------------------------- #
def _relu_matmul_single_kernel(w_ref, x_ref, o_ref):
    # w_ref: [Cin, Cout]   x_ref: [Cin, HW]   o_ref: [Cout, HW]
    x = jnp.maximum(x_ref[...], 0.0)                      # fused ReLU (VPU)
    if x.dtype != w_ref.dtype:                            # opt-in bf16 multiply path
        x = x.astype(w_ref.dtype)
    # Contract dim 0 of both operands: W^T-layout weight @ relu(x) -> [Cout, HW].
    o_ref[...] = lax.dot_general(
        w_ref[...], x, (((0,), (0,)), ((), ())),
        preferred_element_type=jnp.float32,               # f32 accumulate always
    ).astype(o_ref.dtype)


def _relu_matmul_ksplit_kernel(w_ref, x_ref, o_ref, acc_ref):
    # w_ref: [Kt, Cout]  x_ref: [Kt, HW]  o_ref: [Cout, HW]  acc_ref: [Cout, HW] f32
    k = pl.program_id(1)
    x = jnp.maximum(x_ref[...], 0.0)
    if x.dtype != w_ref.dtype:
        x = x.astype(w_ref.dtype)
    partial = lax.dot_general(
        w_ref[...], x, (((0,), (0,)), ((), ())),
        preferred_element_type=jnp.float32,
    )

    @pl.when(k == 0)
    def _():
        acc_ref[...] = partial

    @pl.when(k > 0)
    def _():
        acc_ref[...] = acc_ref[...] + partial

    @pl.when(k == pl.num_programs(1) - 1)
    def _():
        o_ref[...] = acc_ref[...].astype(o_ref.dtype)


# --------------------------------------------------------------------------- #
# Wrappers
# --------------------------------------------------------------------------- #
def prepare_weight(weight_oihw, *, compute_in_bf16=False):
    """One-time weight transform (do this at parameter-init time, NOT per call).

    Returns the 1x1 conv weight as a [Cin, Cout] array (contraction dim on the
    sublane axis so K-split blocks are (8,128)-legal), optionally stored as bf16
    so the static weight costs half the HBM bytes every call.
    """
    Cout, Cin = weight_oihw.shape[0], weight_oihw.shape[1]
    w = weight_oihw.reshape(Cout, Cin).T                  # [Cin, Cout]
    if compute_in_bf16:
        w = w.astype(jnp.bfloat16)
    return w


def _default_k_split(cin):
    """Chip-aware K-split: overlap DMA/compute on v5e/v6e, single step on v7x."""
    try:
        kind = jax.devices()[0].device_kind.lower()
    except Exception:  # pragma: no cover - defensive
        kind = ""
    if "v7" in kind:
        return 1        # step overhead (~0.35 us) rivals the ~0.75 us transfer
    ks = 2              # v5e/v6e: K-tile 880 overlaps input DMA with MXU compute
    if cin % ks != 0 or (cin // ks) % 8 != 0:
        return 1
    return ks


def relu_conv1x1(x_nchw, w_kc, *, k_split=None):
    """relu(x) followed by 1x1 conv. x_nchw: [N, Cin, H, W]; w_kc: [Cin, Cout]
    (from prepare_weight). Output: [N, Cout, H, W] in x's dtype."""
    N, C, H, W = x_nchw.shape
    Cin, Cout = w_kc.shape
    assert Cin == C
    HW = H * W

    if k_split is None:
        k_split = _default_k_split(C)
    if C % k_split != 0 or (C // k_split) % 8 != 0:
        raise ValueError(f"k_split={k_split} must divide Cin={C} into multiples of 8")
    kt = C // k_split

    # Free reshape of the contiguous NCHW buffer -> [N, Cin, H*W].
    x_b = x_nchw.reshape(N, C, HW)

    out_dtype = x_nchw.dtype
    cost = pl.CostEstimate(
        flops=2 * N * HW * C * Cout,
        transcendentals=0,
        bytes_accessed=(x_b.size * x_b.dtype.itemsize
                        + w_kc.size * w_kc.dtype.itemsize
                        + N * Cout * HW * jnp.dtype(out_dtype).itemsize),
    )

    if k_split == 1:
        # Single grid step per batch element (v7x style): everything VMEM-resident.
        out = pl.pallas_call(
            _relu_matmul_single_kernel,
            out_shape=jax.ShapeDtypeStruct((N, Cout, HW), out_dtype),
            grid=(N,),
            in_specs=[
                # Constant index_map -> second pipeline buffer is dead weight
                # (~0.9 MB); harmless at this footprint.
                pl.BlockSpec((C, Cout), lambda n: (0, 0)),
                pl.BlockSpec((None, C, HW), lambda n: (n, 0, 0)),
            ],
            out_specs=pl.BlockSpec((None, Cout, HW), lambda n: (n, 0, 0)),
            cost_estimate=cost,
            compiler_params=pltpu.CompilerParams(
                dimension_semantics=("parallel",)),
        )(w_kc, x_b)
    else:
        # K-split over Cin: DMA of tile k+1 overlaps compute of tile k.
        out = pl.pallas_call(
            _relu_matmul_ksplit_kernel,
            out_shape=jax.ShapeDtypeStruct((N, Cout, HW), out_dtype),
            grid=(N, k_split),
            in_specs=[
                pl.BlockSpec((kt, Cout), lambda n, k: (k, 0)),
                pl.BlockSpec((None, kt, HW), lambda n, k: (n, k, 0)),
            ],
            out_specs=pl.BlockSpec((None, Cout, HW), lambda n, k: (n, 0, 0)),
            scratch_shapes=[pltpu.VMEM((Cout, HW), jnp.float32)],
            cost_estimate=cost,
            compiler_params=pltpu.CompilerParams(
                dimension_semantics=("parallel", "arbitrary")),
        )(w_kc, x_b)

    # [N, Cout, H*W] -> NCHW, free reshape.
    return out.reshape(N, Cout, H, W)


def relu_conv1x1_from_oihw(x_nchw, weight_oihw, *, compute_in_bf16=False, k_split=None):
    """Convenience wrapper matching the PyTorch module signature.
    In a real model, call prepare_weight() once at init instead."""
    w_kc = prepare_weight(weight_oihw, compute_in_bf16=compute_in_bf16)
    return relu_conv1x1(x_nchw, w_kc, k_split=k_split)


# --------------------------------------------------------------------------- #
# Self-test
# --------------------------------------------------------------------------- #
if __name__ == "__main__":
    key = jax.random.PRNGKey(0)
    k_x, k_w = jax.random.split(key)

    # Shapes implied by the module: input [1, 1760, 14, 14], weight [128, 1760, 1, 1].
    N, Cin, H, W = 1, 1760, 14, 14
    Cout = 128

    x = jax.random.normal(k_x, (N, Cin, H, W), dtype=jnp.float32)
    bound = 1.0 / (Cin ** 0.5)  # Kaiming-uniform-like init (fan_in = Cin for 1x1 conv)
    weight = jax.random.uniform(
        k_w, (Cout, Cin, 1, 1), dtype=jnp.float32, minval=-bound, maxval=bound
    )

    # Plain-JAX reference of the same math.
    ref = jnp.einsum("nchw,oc->nohw", jnp.maximum(x, 0.0), weight.reshape(Cout, Cin))

    # 1) Exact f32 path (matches the PyTorch module), single-step structure (v7x).
    w_f32 = prepare_weight(weight)
    out_single = jax.block_until_ready(relu_conv1x1(x, w_f32, k_split=1))
    assert out_single.shape == (N, Cout, H, W)
    assert jnp.allclose(out_single, ref, atol=1e-4, rtol=1e-4)

    # 2) Exact f32 path with the Cin-split pipeline (v5e/v6e structure).
    out_ksplit = jax.block_until_ready(relu_conv1x1(x, w_f32, k_split=2))
    assert jnp.allclose(out_ksplit, ref, atol=1e-4, rtol=1e-4)

    # 3) Opt-in bf16 multiply path (f32 accumulate), chip-auto K-split.
    w_bf16 = prepare_weight(weight, compute_in_bf16=True)
    out_bf16 = jax.block_until_ready(relu_conv1x1(x, w_bf16))
    assert jnp.allclose(out_bf16, ref, atol=2e-2, rtol=2e-2)

    print("KERNEL_OK")
</pallas_src>

<mosaic_0001>
module attributes {stable_mosaic.version = 11 : i64} {
  func.func @_relu_matmul_single_kernel(%arg0: i32, %arg1: memref<1760x128xf32, #tpu.memory_space<vmem>>, %arg2: memref<1x1760x196xf32, #tpu.memory_space<vmem>>, %arg3: memref<1x128x196xf32, #tpu.memory_space<vmem>>) attributes {dimension_semantics = [#tpu.dimension_semantics<parallel>], iteration_bounds = array<i64: 1>, scalar_prefetch = 0 : i64, scratch_operands = 0 : i64, tpu.core_type = #tpu.core_type<tc>, window_params = [{pipeline_mode = #tpu.pipeline_mode<synchronous>, transform_indices = @transform_0, window_bounds = array<i64: 1760, 128>}, {transform_indices = @transform_1, window_bounds = array<i64: 1, 1760, 196>}, {transform_indices = @transform_2, window_bounds = array<i64: 1, 128, 196>}]} {
    %c0 = arith.constant 0 : index
    %c0_0 = arith.constant 0 : index
    %c0_1 = arith.constant 0 : index
    %0 = vector.load %arg2[%c0, %c0_0, %c0_1] : memref<1x1760x196xf32, #tpu.memory_space<vmem>>, vector<1x1760x196xf32>
    %1 = vector.shape_cast %0 : vector<1x1760x196xf32> to vector<1760x196xf32>
    %cst = arith.constant 0.000000e+00 : f32
    %2 = vector.broadcast %cst : f32 to vector<1760x196xf32>
    %3 = arith.maximumf %1, %2 : vector<1760x196xf32>
    %c0_2 = arith.constant 0 : index
    %c0_3 = arith.constant 0 : index
    %4 = vector.load %arg1[%c0_2, %c0_3] : memref<1760x128xf32, #tpu.memory_space<vmem>>, vector<1760x128xf32>
    %cst_4 = arith.constant dense<0.000000e+00> : vector<128x196xf32>
    %5 = tpu.matmul %4, %3, %cst_4 {dimension_numbers = #tpu.dot_dimension_numbers<[0], [0], [1], [1], [0, 1, 1, 1], [], []>} : vector<1760x128xf32>, vector<1760x196xf32>, vector<128x196xf32> -> vector<128x196xf32>
    %c0_5 = arith.constant 0 : index
    %c0_6 = arith.constant 0 : index
    %c0_7 = arith.constant 0 : index
    %6 = vector.load %arg3[%c0_5, %c0_6, %c0_7] : memref<1x128x196xf32, #tpu.memory_space<vmem>>, vector<1x128x196xf32>
    %7 = vector.shape_cast %6 : vector<1x128x196xf32> to vector<128x196xf32>
    %8 = vector.shape_cast %5 : vector<128x196xf32> to vector<1x128x196xf32>
    tpu.vector_store %arg3[%c0_5, %c0_6, %c0_7], %8 {strides = array<i32>} : memref<1x128x196xf32, #tpu.memory_space<vmem>>, vector<1x128x196xf32>,
    return
  }
  func.func @transform_0(%arg0: i32) -> (i32, i32) {
    %c0_i32 = arith.constant 0 : i32
    %c0_i32_0 = arith.constant 0 : i32
    %c0_i32_1 = arith.constant 0 : i32
    return %c0_i32, %c0_i32_0 : i32, i32
  }
  func.func @transform_1(%arg0: i32) -> (i32, i32, i32) {
    %c0_i32 = arith.constant 0 : i32
    %c0_i32_0 = arith.constant 0 : i32
    %c0_i32_1 = arith.constant 0 : i32
    return %arg0, %c0_i32, %c0_i32_0 : i32, i32, i32
  }
  func.func @transform_2(%arg0: i32) -> (i32, i32, i32) {
    %c0_i32 = arith.constant 0 : i32
    %c0_i32_0 = arith.constant 0 : i32
    %c0_i32_1 = arith.constant 0 : i32
    return %arg0, %c0_i32, %c0_i32_0 : i32, i32, i32
  }
}

</mosaic_0001>

<llo_original>
// kernel: tpu_custom_call.1
$region0: #{tpu_custom_call.1}
  #allocation0 [shape = 'u32[]', space=smem, size = 0x4, offset = 0x4, fixed_abs, tag = 'smem constant byte address 0x4 - core index']
  #allocation1 [shape = 'u32[144,128]{1,0:T(1,128)}', space=vmem, size = 0x12000, scoped, tag = 'internal scratch']
  %s0 = inlined_call_operand.vmem [shape: f32[1760,128], index: 0, kind: input, shape index: {}]
  %s1 = inlined_call_operand.vmem [shape: f32[1,1760,196], index: 1, kind: input, shape index: {}]
  %s2 = inlined_call_operand.vmem [shape: f32[1,128,196], index: 2, kind: output, shape index: {}]
  %s3 = sld [smem:[#allocation0]]
  $region18: #{tpu_custom_call.1} parent=0
    _
  %s5 = ssub.s32 1, %s3
  %s6 = scalar_select 0, %s5, %s3
  // Predicated region
  $region2: #{tpu_custom_call.1} parent=0 // pred_check
    _
  $region3: #{tpu_custom_call.1} parent=0 // pred_check_branch
    %8 = sbr.rel (0) target = $region5
  $region4: #{tpu_custom_call.1} parent=0 // pred_region
    _
  $region5: #{tpu_custom_call.1} parent=0 // pred_fallthru
    _
  // Predicated region
  $region6: #{tpu_custom_call.1} parent=0 // pred_check
    _
  $region7: #{tpu_custom_call.1} parent=0 // pred_check_branch
    %10 = sbr.rel (0) target = $region9
  $region8: #{tpu_custom_call.1} parent=0 // pred_region
    _
  $region9: #{tpu_custom_call.1} parent=0 // pred_fallthru
    _
  %v11 = vld [vmem:[%s1] sm:$0xff]
  %v12 = vld [vmem:[%s1 + $0x8] sm:$0xff]
  %v13 = vld [vmem:[%s1 + $0x10] sm:$0xff]
  %v14 = vld [vmem:[%s1 + $0x18] sm:$0xff]
  %v15 = vld [vmem:[%s1 + $0x20] sm:$0xff]
  %v16 = vld [vmem:[%s1 + $0x28] sm:$0xff]
  %v17 = vld [vmem:[%s1 + $0x30] sm:$0xff]
  %v18 = vld [vmem:[%s1 + $0x38] sm:$0xff]
  %v19 = vld [vmem:[%s1 + $0x40] sm:$0xff]
  %v20 = vld [vmem:[%s1 + $0x48] sm:$0xff]
  %v21 = vld [vmem:[%s1 + $0x50] sm:$0xff]
  %v22 = vld [vmem:[%s1 + $0x58] sm:$0xff]
  %v23 = vld [vmem:[%s1 + $0x60] sm:$0xff]
  %v24 = vld [vmem:[%s1 + $0x68] sm:$0xff]
  %v25 = vld [vmem:[%s1 + $0x70] sm:$0xff]
  %v26 = vld [vmem:[%s1 + $0x78] sm:$0xff]
  %v27 = vld [vmem:[%s1 + $0x80] sm:$0xff]
  %v28 = vld [vmem:[%s1 + $0x88] sm:$0xff]
  %v29 = vld [vmem:[%s1 + $0x90] sm:$0xff]
  %v30 = vld [vmem:[%s1 + $0x98] sm:$0xff]
  %v31 = vld [vmem:[%s1 + $0xa0] sm:$0xff]
  %v32 = vld [vmem:[%s1 + $0xa8] sm:$0xff]
  %v33 = vld [vmem:[%s1 + $0xb0] sm:$0xff]
  %v34 = vld [vmem:[%s1 + $0xb8] sm:$0xff]
  %v35 = vld [vmem:[%s1 + $0xc0] sm:$0xff]
  %v36 = vld [vmem:[%s1 + $0xc8] sm:$0xff]
  %v37 = vld [vmem:[%s1 + $0xd0] sm:$0xff]
  %v38 = vld [vmem:[%s1 + $0xd8] sm:$0xff]
  %v39 = vld [vmem:[%s1 + $0xe0] sm:$0xff]
  %v40 = vld [vmem:[%s1 + $0xe8] sm:$0xff]
  %v41 = vld [vmem:[%s1 + $0xf0] sm:$0xff]
  %v42 = vld [vmem:[%s1 + $0xf8] sm:$0xff]
  %v43 = vld [vmem:[%s1 + $0x100] sm:$0xff]
  %v44 = vld [vmem:[%s1 + $0x108] sm:$0xff]
  %v45 = vld [vmem:[%s1 + $0x110] sm:$0xff]
  %v46 = vld [vmem:[%s1 + $0x118] sm:$0xff]
  %v47 = vld [vmem:[%s1 + $0x120] sm:$0xff]
  %v48 = vld [vmem:[%s1 + $0x128] sm:$0xff]
  %v49 = vld [vmem:[%s1 + $0x130] sm:$0xff]
  %v50 = vld [vmem:[%s1 + $0x138] sm:$0xff]
  %v51 = vld [vmem:[%s1 + $0x140] sm:$0xff]
  %v52 = vld [vmem:[%s1 + $0x148] sm:$0xff]
  %v53 = vld [vmem:[%s1 + $0x150] sm:$0xff]
  %v54 = vld [vmem:[%s1 + $0x158] sm:$0xff]
  %v55 = vld [vmem:[%s1 + $0x160] sm:$0xff]
  %v56 = vld [vmem:[%s1 + $0x168] sm:$0xff]
  %v57 = vld [vmem:[%s1 + $0x170] sm:$0xff]
  %v58 = vld [vmem:[%s1 + $0x178] sm:$0xff]
  %v59 = vld [vmem:[%s1 + $0x180] sm:$0xff]
  %v60 = vld [vmem:[%s1 + $0x188] sm:$0xff]
  %v61 = vld [vmem:[%s1 + $0x190] sm:$0xff]
  %v62 = vld [vmem:[%s1 + $0x198] sm:$0xff]
  %v63 = vld [vmem:[%s1 + $0x1a0] sm:$0xff]
  %v64 = vld [vmem:[%s1 + $0x1a8] sm:$0xff]
  %v65 = vld [vmem:[%s1 + $0x1b0] sm:$0xff]
  %v66 = vld [vmem:[%s1 + $0x1b8] sm:$0xff]
  %v67 = vld [vmem:[%s1 + $0x1c0] sm:$0xff]
  %v68 = vld [vmem:[%s1 + $0x1c8] sm:$0xff]
  %v69 = vld [vmem:[%s1 + $0x1d0] sm:$0xff]
  %v70 = vld [vmem:[%s1 + $0x1d8] sm:$0xff]
  %v71 = vld [vmem:[%s1 + $0x1e0] sm:$0xff]
  %v72 = vld [vmem:[%s1 + $0x1e8] sm:$0xff]
  %v73 = vld [vmem:[%s1 + $0x1f0] sm:$0xff]
  %v74 = vld [vmem:[%s1 + $0x1f8] sm:$0xff]
  %v75 = vld [vmem:[%s1 + $0x200] sm:$0xff]
  %v76 = vld [vmem:[%s1 + $0x208] sm:$0xff]
  %v77 = vld [vmem:[%s1 + $0x210] sm:$0xff]
  %v78 = vld [vmem:[%s1 + $0x218] sm:$0xff]
  %v79 = vld [vmem:[%s1 + $0x220] sm:$0xff]
  %v80 = vld [vmem:[%s1 + $0x228] sm:$0xff]
  %v81 = vld [vmem:[%s1 + $0x230] sm:$0xff]
  %v82 = vld [vmem:[%s1 + $0x238] sm:$0xff]
  %v83 = vld [vmem:[%s1 + $0x240] sm:$0xff]
  %v84 = vld [vmem:[%s1 + $0x248] sm:$0xff]
  %v85 = vld [vmem:[%s1 + $0x250] sm:$0xff]
  %v86 = vld [vmem:[%s1 + $0x258] sm:$0xff]
  %v87 = vld [vmem:[%s1 + $0x260] sm:$0xff]
  %v88 = vld [vmem:[%s1 + $0x268] sm:$0xff]
  %v89 = vld [vmem:[%s1 + $0x270] sm:$0xff]
  %v90 = vld [vmem:[%s1 + $0x278] sm:$0xff]
  %v91 = vld [vmem:[%s1 + $0x280] sm:$0xff]
  %v92 = vld [vmem:[%s1 + $0x288] sm:$0xff]
  %v93 = vld [vmem:[%s1 + $0x290] sm:$0xff]
  %v94 = vld [vmem:[%s1 + $0x298] sm:$0xff]
  %v95 = vld [vmem:[%s1 + $0x2a0] sm:$0xff]
  %v96 = vld [vmem:[%s1 + $0x2a8] sm:$0xff]
  %v97 = vld [vmem:[%s1 + $0x2b0] sm:$0xff]
  %v98 = vld [vmem:[%s1 + $0x2b8] sm:$0xff]
  %v99 = vld [vmem:[%s1 + $0x2c0] sm:$0xff]
  %v100 = vld [vmem:[%s1 + $0x2c8] sm:$0xff]
  %v101 = vld [vmem:[%s1 + $0x2d0] sm:$0xff]
  %v102 = vld [vmem:[%s1 + $0x2d8] sm:$0xff]
  %v103 = vld [vmem:[%s1 + $0x2e0] sm:$0xff]
  %v104 = vld [vmem:[%s1 + $0x2e8] sm:$0xff]
  %v105 = vld [vmem:[%s1 + $0x2f0] sm:$0xff]
  %v106 = vld [vmem:[%s1 + $0x2f8] sm:$0xff]
  %v107 = vld [vmem:[%s1 + $0x300] sm:$0xff]
  %v108 = vld [vmem:[%s1 + $0x308] sm:$0xff]
  %v109 = vld [vmem:[%s1 + $0x310] sm:$0xff]
  %v110 = vld [vmem:[%s1 + $0x318] sm:$0xff]
  %v111 = vld [vmem:[%s1 + $0x320] sm:$0xff]
  %v112 = vld [vmem:[%s1 + $0x328] sm:$0xff]
  %v113 = vld [vmem:[%s1 + $0x330] sm:$0xff]
  %v114 = vld [vmem:[%s1 + $0x338] sm:$0xff]
  %v115 = vld [vmem:[%s1 + $0x340] sm:$0xff]
  %v116 = vld [vmem:[%s1 + $0x348] sm:$0xff]
  %v117 = vld [vmem:[%s1 + $0x350] sm:$0xff]
  %v118 = vld [vmem:[%s1 + $0x358] sm:$0xff]
  %v119 = vld [vmem:[%s1 + $0x360] sm:$0xff]
  %v120 = vld [vmem:[%s1 + $0x368] sm:$0xff]
  %v121 = vld [vmem:[%s1 + $0x370] sm:$0xff]
  %v122 = vld [vmem:[%s1 + $0x378] sm:$0xff]
  %v123 = vld [vmem:[%s1 + $0x380] sm:$0xff]
  %v124 = vld [vmem:[%s1 + $0x388] sm:$0xff]
  %v125 = vld [vmem:[%s1 + $0x390] sm:$0xff]
  %v126 = vld [vmem:[%s1 + $0x398] sm:$0xff]
  %v127 = vld [vmem:[%s1 + $0x3a0] sm:$0xff]
  %v128 = vld [vmem:[%s1 + $0x3a8] sm:$0xff]
  %v129 = vld [vmem:[%s1 + $0x3b0] sm:$0xff]
  %v130 = vld [vmem:[%s1 + $0x3b8] sm:$0xff]
  %v131 = vld [vmem:[%s1 + $0x3c0] sm:$0xff]
  %v132 = vld [vmem:[%s1 + $0x3c8] sm:$0xff]
  %v133 = vld [vmem:[%s1 + $0x3d0] sm:$0xff]
  %v134 = vld [vmem:[%s1 + $0x3d8] sm:$0xff]
  %v135 = vld [vmem:[%s1 + $0x3e0] sm:$0xff]
  %v136 = vld [vmem:[%s1 + $0x3e8] sm:$0xff]
  %v137 = vld [vmem:[%s1 + $0x3f0] sm:$0xff]
  %v138 = vld [vmem:[%s1 + $0x3f8] sm:$0xff]
  %v139 = vld [vmem:[%s1 + $0x400] sm:$0xff]
  %v140 = vld [vmem:[%s1 + $0x408] sm:$0xff]
  %v141 = vld [vmem:[%s1 + $0x410] sm:$0xff]
  %v142 = vld [vmem:[%s1 + $0x418] sm:$0xff]
  %v143 = vld [vmem:[%s1 + $0x420] sm:$0xff]
  %v144 = vld [vmem:[%s1 + $0x428] sm:$0xff]
  %v145 = vld [vmem:[%s1 + $0x430] sm:$0xff]
  %v146 = vld [vmem:[%s1 + $0x438] sm:$0xff]
  %v147 = vld [vmem:[%s1 + $0x440] sm:$0xff]
  %v148 = vld [vmem:[%s1 + $0x448] sm:$0xff]
  %v149 = vld [vmem:[%s1 + $0x450] sm:$0xff]
  %v150 = vld [vmem:[%s1 + $0x458] sm:$0xff]
  %v151 = vld [vmem:[%s1 + $0x460] sm:$0xff]
  %v152 = vld [vmem:[%s1 + $0x468] sm:$0xff]
  %v153 = vld [vmem:[%s1 + $0x470] sm:$0xff]
  %v154 = vld [vmem:[%s1 + $0x478] sm:$0xff]
  %v155 = vld [vmem:[%s1 + $0x480] sm:$0xff]
  %v156 = vld [vmem:[%s1 + $0x488] sm:$0xff]
  %v157 = vld [vmem:[%s1 + $0x490] sm:$0xff]
  %v158 = vld [vmem:[%s1 + $0x498] sm:$0xff]
  %v159 = vld [vmem:[%s1 + $0x4a0] sm:$0xff]
  %v160 = vld [vmem:[%s1 + $0x4a8] sm:$0xff]
  %v161 = vld [vmem:[%s1 + $0x4b0] sm:$0xff]
  %v162 = vld [vmem:[%s1 + $0x4b8] sm:$0xff]
  %v163 = vld [vmem:[%s1 + $0x4c0] sm:$0xff]
  %v164 = vld [vmem:[%s1 + $0x4c8] sm:$0xff]
  %v165 = vld [vmem:[%s1 + $0x4d0] sm:$0xff]
  %v166 = vld [vmem:[%s1 + $0x4d8] sm:$0xff]
  %v167 = vld [vmem:[%s1 + $0x4e0] sm:$0xff]
  %v168 = vld [vmem:[%s1 + $0x4e8] sm:$0xff]
  %v169 = vld [vmem:[%s1 + $0x4f0] sm:$0xff]
  %v170 = vld [vmem:[%s1 + $0x4f8] sm:$0xff]
  %v171 = vld [vmem:[%s1 + $0x500] sm:$0xff]
  %v172 = vld [vmem:[%s1 + $0x508] sm:$0xff]
  %v173 = vld [vmem:[%s1 + $0x510] sm:$0xff]
  %v174 = vld [vmem:[%s1 + $0x518] sm:$0xff]
  %v175 = vld [vmem:[%s1 + $0x520] sm:$0xff]
  %v176 = vld [vmem:[%s1 + $0x528] sm:$0xff]
  %v177 = vld [vmem:[%s1 + $0x530] sm:$0xff]
  %v178 = vld [vmem:[%s1 + $0x538] sm:$0xff]
  %v179 = vld [vmem:[%s1 + $0x540] sm:$0xff]
  %v180 = vld [vmem:[%s1 + $0x548] sm:$0xff]
  %v181 = vld [vmem:[%s1 + $0x550] sm:$0xff]
  %v182 = vld [vmem:[%s1 + $0x558] sm:$0xff]
  %v183 = vld [vmem:[%s1 + $0x560] sm:$0xff]
  %v184 = vld [vmem:[%s1 + $0x568] sm:$0xff]
  %v185 = vld [vmem:[%s1 + $0x570] sm:$0xff]
  %v186 = vld [vmem:[%s1 + $0x578] sm:$0xff]
  %v187 = vld [vmem:[%s1 + $0x580] sm:$0xff]
  %v188 = vld [vmem:[%s1 + $0x588] sm:$0xff]
  %v189 = vld [vmem:[%s1 + $0x590] sm:$0xff]
  %v190 = vld [vmem:[%s1 + $0x598] sm:$0xff]
  %v191 = vld [vmem:[%s1 + $0x5a0] sm:$0xff]
  %v192 = vld [vmem:[%s1 + $0x5a8] sm:$0xff]
  %v193 = vld [vmem:[%s1 + $0x5b0] sm:$0xff]
  %v194 = vld [vmem:[%s1 + $0x5b8] sm:$0xff]
  %v195 = vld [vmem:[%s1 + $0x5c0] sm:$0xff]
  %v196 = vld [vmem:[%s1 + $0x5c8] sm:$0xff]
  %v197 = vld [vmem:[%s1 + $0x5d0] sm:$0xff]
  %v198 = vld [vmem:[%s1 + $0x5d8] sm:$0xff]
  %v199 = vld [vmem:[%s1 + $0x5e0] sm:$0xff]
  %v200 = vld [vmem:[%s1 + $0x5e8] sm:$0xff]
  %v201 = vld [vmem:[%s1 + $0x5f0] sm:$0xff]
  %v202 = vld [vmem:[%s1 + $0x5f8] sm:$0xff]
  %v203 = vld [vmem:[%s1 + $0x600] sm:$0xff]
  %v204 = vld [vmem:[%s1 + $0x608] sm:$0xff]
  %v205 = vld [vmem:[%s1 + $0x610] sm:$0xff]
  %v206 = vld [vmem:[%s1 + $0x618] sm:$0xff]
  %v207 = vld [vmem:[%s1 + $0x620] sm:$0xff]
  %v208 = vld [vmem:[%s1 + $0x628] sm:$0xff]
  %v209 = vld [vmem:[%s1 + $0x630] sm:$0xff]
  %v210 = vld [vmem:[%s1 + $0x638] sm:$0xff]
  %v211 = vld [vmem:[%s1 + $0x640] sm:$0xff]
  %v212 = vld [vmem:[%s1 + $0x648] sm:$0xff]
  %v213 = vld [vmem:[%s1 + $0x650] sm:$0xff]
  %v214 = vld [vmem:[%s1 + $0x658] sm:$0xff]
  %v215 = vld [vmem:[%s1 + $0x660] sm:$0xff]
  %v216 = vld [vmem:[%s1 + $0x668] sm:$0xff]
  %v217 = vld [vmem:[%s1 + $0x670] sm:$0xff]
  %v218 = vld [vmem:[%s1 + $0x678] sm:$0xff]
  %v219 = vld [vmem:[%s1 + $0x680] sm:$0xff]
  %v220 = vld [vmem:[%s1 + $0x688] sm:$0xff]
  %v221 = vld [vmem:[%s1 + $0x690] sm:$0xff]
  %v222 = vld [vmem:[%s1 + $0x698] sm:$0xff]
  %v223 = vld [vmem:[%s1 + $0x6a0] sm:$0xff]
  %v224 = vld [vmem:[%s1 + $0x6a8] sm:$0xff]
  %v225 = vld [vmem:[%s1 + $0x6b0] sm:$0xff]
  %v226 = vld [vmem:[%s1 + $0x6b8] sm:$0xff]
  %v227 = vld [vmem:[%s1 + $0x6c0] sm:$0xff]
  %v228 = vld [vmem:[%s1 + $0x6c8] sm:$0xff]
  %v229 = vld [vmem:[%s1 + $0x6d0] sm:$0xff]
  %v230 = vld [vmem:[%s1 + $0x6d8] sm:$0xff]
  %v231 = vld [vmem:[%s1 + $0x6e0] sm:$0xff]
  %v232 = vld [vmem:[%s1 + $0x6e8] sm:$0xff]
  %v233 = vld [vmem:[%s1 + $0x6f0] sm:$0xff]
  %v234 = vld [vmem:[%s1 + $0x6f8] sm:$0xff]
  %v235 = vld [vmem:[%s1 + $0x700] sm:$0xff]
  %v236 = vld [vmem:[%s1 + $0x708] sm:$0xff]
  %v237 = vld [vmem:[%s1 + $0x710] sm:$0xff]
  %v238 = vld [vmem:[%s1 + $0x718] sm:$0xff]
  %v239 = vld [vmem:[%s1 + $0x720] sm:$0xff]
  %v240 = vld [vmem:[%s1 + $0x728] sm:$0xff]
  %v241 = vld [vmem:[%s1 + $0x730] sm:$0xff]
  %v242 = vld [vmem:[%s1 + $0x738] sm:$0xff]
  %v243 = vld [vmem:[%s1 + $0x740] sm:$0xff]
  %v244 = vld [vmem:[%s1 + $0x748] sm:$0xff]
  %v245 = vld [vmem:[%s1 + $0x750] sm:$0xff]
  %v246 = vld [vmem:[%s1 + $0x758] sm:$0xff]
  %v247 = vld [vmem:[%s1 + $0x760] sm:$0xff]
  %v248 = vld [vmem:[%s1 + $0x768] sm:$0xff]
  %v249 = vld [vmem:[%s1 + $0x770] sm:$0xff]
  %v250 = vld [vmem:[%s1 + $0x778] sm:$0xff]
  %v251 = vld [vmem:[%s1 + $0x780] sm:$0xff]
  %v252 = vld [vmem:[%s1 + $0x788] sm:$0xff]
  %v253 = vld [vmem:[%s1 + $0x790] sm:$0xff]
  %v254 = vld [vmem:[%s1 + $0x798] sm:$0xff]
  %v255 = vld [vmem:[%s1 + $0x7a0] sm:$0xff]
  %v256 = vld [vmem:[%s1 + $0x7a8] sm:$0xff]
  %v257 = vld [vmem:[%s1 + $0x7b0] sm:$0xff]
  %v258 = vld [vmem:[%s1 + $0x7b8] sm:$0xff]
  %v259 = vld [vmem:[%s1 + $0x7c0] sm:$0xff]
  %v260 = vld [vmem:[%s1 + $0x7c8] sm:$0xff]
  %v261 = vld [vmem:[%s1 + $0x7d0] sm:$0xff]
  %v262 = vld [vmem:[%s1 + $0x7d8] sm:$0xff]
  %v263 = vld [vmem:[%s1 + $0x7e0] sm:$0xff]
  %v264 = vld [vmem:[%s1 + $0x7e8] sm:$0xff]
  %v265 = vld [vmem:[%s1 + $0x7f0] sm:$0xff]
  %v266 = vld [vmem:[%s1 + $0x7f8] sm:$0xff]
  %v267 = vld [vmem:[%s1 + $0x800] sm:$0xff]
  %v268 = vld [vmem:[%s1 + $0x808] sm:$0xff]
  %v269 = vld [vmem:[%s1 + $0x810] sm:$0xff]
  %v270 = vld [vmem:[%s1 + $0x818] sm:$0xff]
  %v271 = vld [vmem:[%s1 + $0x820] sm:$0xff]
  %v272 = vld [vmem:[%s1 + $0x828] sm:$0xff]
  %v273 = vld [vmem:[%s1 + $0x830] sm:$0xff]
  %v274 = vld [vmem:[%s1 + $0x838] sm:$0xff]
  %v275 = vld [vmem:[%s1 + $0x840] sm:$0xff]
  %v276 = vld [vmem:[%s1 + $0x848] sm:$0xff]
  %v277 = vld [vmem:[%s1 + $0x850] sm:$0xff]
  %v278 = vld [vmem:[%s1 + $0x858] sm:$0xff]
  %v279 = vld [vmem:[%s1 + $0x860] sm:$0xff]
  %v280 = vld [vmem:[%s1 + $0x868] sm:$0xff]
  %v281 = vld [vmem:[%s1 + $0x870] sm:$0xff]
  %v282 = vld [vmem:[%s1 + $0x878] sm:$0xff]
  %v283 = vld [vmem:[%s1 + $0x880] sm:$0xff]
  %v284 = vld [vmem:[%s1 + $0x888] sm:$0xff]
  %v285 = vld [vmem:[%s1 + $0x890] sm:$0xff]
  %v286 = vld [vmem:[%s1 + $0x898] sm:$0xff]
  %v287 = vld [vmem:[%s1 + $0x8a0] sm:$0xff]
  %v288 = vld [vmem:[%s1 + $0x8a8] sm:$0xff]
  %v289 = vld [vmem:[%s1 + $0x8b0] sm:$0xff]
  %v290 = vld [vmem:[%s1 + $0x8b8] sm:$0xff]
  %v291 = vld [vmem:[%s1 + $0x8c0] sm:$0xff]
  %v292 = vld [vmem:[%s1 + $0x8c8] sm:$0xff]
  %v293 = vld [vmem:[%s1 + $0x8d0] sm:$0xff]
  %v294 = vld [vmem:[%s1 + $0x8d8] sm:$0xff]
  %v295 = vld [vmem:[%s1 + $0x8e0] sm:$0xff]
  %v296 = vld [vmem:[%s1 + $0x8e8] sm:$0xff]
  %v297 = vld [vmem:[%s1 + $0x8f0] sm:$0xff]
  %v298 = vld [vmem:[%s1 + $0x8f8] sm:$0xff]
  %v299 = vld [vmem:[%s1 + $0x900] sm:$0xff]
  %v300 = vld [vmem:[%s1 + $0x908] sm:$0xff]
  %v301 = vld [vmem:[%s1 + $0x910] sm:$0xff]
  %v302 = vld [vmem:[%s1 + $0x918] sm:$0xff]
  %v303 = vld [vmem:[%s1 + $0x920] sm:$0xff]
  %v304 = vld [vmem:[%s1 + $0x928] sm:$0xff]
  %v305 = vld [vmem:[%s1 + $0x930] sm:$0xff]
  %v306 = vld [vmem:[%s1 + $0x938] sm:$0xff]
  %v307 = vld [vmem:[%s1 + $0x940] sm:$0xff]
  %v308 = vld [vmem:[%s1 + $0x948] sm:$0xff]
  %v309 = vld [vmem:[%s1 + $0x950] sm:$0xff]
  %v310 = vld [vmem:[%s1 + $0x958] sm:$0xff]
  %v311 = vld [vmem:[%s1 + $0x960] sm:$0xff]
  %v312 = vld [vmem:[%s1 + $0x968] sm:$0xff]
  %v313 = vld [vmem:[%s1 + $0x970] sm:$0xff]
  %v314 = vld [vmem:[%s1 + $0x978] sm:$0xff]
  %v315 = vld [vmem:[%s1 + $0x980] sm:$0xff]
  %v316 = vld [vmem:[%s1 + $0x988] sm:$0xff]
  %v317 = vld [vmem:[%s1 + $0x990] sm:$0xff]
  %v318 = vld [vmem:[%s1 + $0x998] sm:$0xff]
  %v319 = vld [vmem:[%s1 + $0x9a0] sm:$0xff]
  %v320 = vld [vmem:[%s1 + $0x9a8] sm:$0xff]
  %v321 = vld [vmem:[%s1 + $0x9b0] sm:$0xff]
  %v322 = vld [vmem:[%s1 + $0x9b8] sm:$0xff]
  %v323 = vld [vmem:[%s1 + $0x9c0] sm:$0xff]
  %v324 = vld [vmem:[%s1 + $0x9c8] sm:$0xff]
  %v325 = vld [vmem:[%s1 + $0x9d0] sm:$0xff]
  %v326 = vld [vmem:[%s1 + $0x9d8] sm:$0xff]
  %v327 = vld [vmem:[%s1 + $0x9e0] sm:$0xff]
  %v328 = vld [vmem:[%s1 + $0x9e8] sm:$0xff]
  %v329 = vld [vmem:[%s1 + $0x9f0] sm:$0xff]
  %v330 = vld [vmem:[%s1 + $0x9f8] sm:$0xff]
  %v331 = vld [vmem:[%s1 + $0xa00] sm:$0xff]
  %v332 = vld [vmem:[%s1 + $0xa08] sm:$0xff]
  %v333 = vld [vmem:[%s1 + $0xa10] sm:$0xff]
  %v334 = vld [vmem:[%s1 + $0xa18] sm:$0xff]
  %v335 = vld [vmem:[%s1 + $0xa20] sm:$0xff]
  %v336 = vld [vmem:[%s1 + $0xa28] sm:$0xff]
  %v337 = vld [vmem:[%s1 + $0xa30] sm:$0xff]
  %v338 = vld [vmem:[%s1 + $0xa38] sm:$0xff]
  %v339 = vld [vmem:[%s1 + $0xa40] sm:$0xff]
  %v340 = vld [vmem:[%s1 + $0xa48] sm:$0xff]
  %v341 = vld [vmem:[%s1 + $0xa50] sm:$0xff]
  %v342 = vld [vmem:[%s1 + $0xa58] sm:$0xff]
  %v343 = vld [vmem:[%s1 + $0xa60] sm:$0xff]
  %v344 = vld [vmem:[%s1 + $0xa68] sm:$0xff]
  %v345 = vld [vmem:[%s1 + $0xa70] sm:$0xff]
  %v346 = vld [vmem:[%s1 + $0xa78] sm:$0xff]
  %v347 = vld [vmem:[%s1 + $0xa80] sm:$0xff]
  %v348 = vld [vmem:[%s1 + $0xa88] sm:$0xff]
  %v349 = vld [vmem:[%s1 + $0xa90] sm:$0xff]
  %v350 = vld [vmem:[%s1 + $0xa98] sm:$0xff]
  %v351 = vld [vmem:[%s1 + $0xaa0] sm:$0xff]
  %v352 = vld [vmem:[%s1 + $0xaa8] sm:$0xff]
  %v353 = vld [vmem:[%s1 + $0xab0] sm:$0xff]
  %v354 = vld [vmem:[%s1 + $0xab8] sm:$0xff]
  %v355 = vld [vmem:[%s1 + $0xac0] sm:$0xff]
  %v356 = vld [vmem:[%s1 + $0xac8] sm:$0xff]
  %v357 = vld [vmem:[%s1 + $0xad0] sm:$0xff]
  %v358 = vld [vmem:[%s1 + $0xad8] sm:$0xff]
  %v359 = vld [vmem:[%s1 + $0xae0] sm:$0xff]
  %v360 = vld [vmem:[%s1 + $0xae8] sm:$0xff]
  %v361 = vld [vmem:[%s1 + $0xaf0] sm:$0xff]
  %v362 = vld [vmem:[%s1 + $0xaf8] sm:$0xff]
  %v363 = vld [vmem:[%s1 + $0xb00] sm:$0xff]
  %v364 = vld [vmem:[%s1 + $0xb08] sm:$0xff]
  %v365 = vld [vmem:[%s1 + $0xb10] sm:$0xff]
  %v366 = vld [vmem:[%s1 + $0xb18] sm:$0xff]
  %v367 = vld [vmem:[%s1 + $0xb20] sm:$0xff]
  %v368 = vld [vmem:[%s1 + $0xb28] sm:$0xff]
  %v369 = vld [vmem:[%s1 + $0xb30] sm:$0xff]
  %v370 = vld [vmem:[%s1 + $0xb38] sm:$0xff]
  %v371 = vld [vmem:[%s1 + $0xb40] sm:$0xff]
  %v372 = vld [vmem:[%s1 + $0xb48] sm:$0xff]
  %v373 = vld [vmem:[%s1 + $0xb50] sm:$0xff]
  %v374 = vld [vmem:[%s1 + $0xb58] sm:$0xff]
  %v375 = vld [vmem:[%s1 + $0xb60] sm:$0xff]
  %v376 = vld [vmem:[%s1 + $0xb68] sm:$0xff]
  %v377 = vld [vmem:[%s1 + $0xb70] sm:$0xff]
  %v378 = vld [vmem:[%s1 + $0xb78] sm:$0xff]
  %v379 = vld [vmem:[%s1 + $0xb80] sm:$0xff]
  %v380 = vld [vmem:[%s1 + $0xb88] sm:$0xff]
  %v381 = vld [vmem:[%s1 + $0xb90] sm:$0xff]
  %v382 = vld [vmem:[%s1 + $0xb98] sm:$0xff]
  %v383 = vld [vmem:[%s1 + $0xba0] sm:$0xff]
  %v384 = vld [vmem:[%s1 + $0xba8] sm:$0xff]
  %v385 = vld [vmem:[%s1 + $0xbb0] sm:$0xff]
  %v386 = vld [vmem:[%s1 + $0xbb8] sm:$0xff]
  %v387 = vld [vmem:[%s1 + $0xbc0] sm:$0xff]
  %v388 = vld [vmem:[%s1 + $0xbc8] sm:$0xff]
  %v389 = vld [vmem:[%s1 + $0xbd0] sm:$0xff]
  %v390 = vld [vmem:[%s1 + $0xbd8] sm:$0xff]
  %v391 = vld [vmem:[%s1 + $0xbe0] sm:$0xff]
  %v392 = vld [vmem:[%s1 + $0xbe8] sm:$0xff]
  %v393 = vld [vmem:[%s1 + $0xbf0] sm:$0xff]
  %v394 = vld [vmem:[%s1 + $0xbf8] sm:$0xff]
  %v395 = vld [vmem:[%s1 + $0xc00] sm:$0xff]
  %v396 = vld [vmem:[%s1 + $0xc08] sm:$0xff]
  %v397 = vld [vmem:[%s1 + $0xc10] sm:$0xff]
  %v398 = vld [vmem:[%s1 + $0xc18] sm:$0xff]
  %v399 = vld [vmem:[%s1 + $0xc20] sm:$0xff]
  %v400 = vld [vmem:[%s1 + $0xc28] sm:$0xff]
  %v401 = vld [vmem:[%s1 + $0xc30] sm:$0xff]
  %v402 = vld [vmem:[%s1 + $0xc38] sm:$0xff]
  %v403 = vld [vmem:[%s1 + $0xc40] sm:$0xff]
  %v404 = vld [vmem:[%s1 + $0xc48] sm:$0xff]
  %v405 = vld [vmem:[%s1 + $0xc50] sm:$0xff]
  %v406 = vld [vmem:[%s1 + $0xc58] sm:$0xff]
  %v407 = vld [vmem:[%s1 + $0xc60] sm:$0xff]
  %v408 = vld [vmem:[%s1 + $0xc68] sm:$0xff]
  %v409 = vld [vmem:[%s1 + $0xc70] sm:$0xff]
  %v410 = vld [vmem:[%s1 + $0xc78] sm:$0xff]
  %v411 = vld [vmem:[%s1 + $0xc80] sm:$0xff]
  %v412 = vld [vmem:[%s1 + $0xc88] sm:$0xff]
  %v413 = vld [vmem:[%s1 + $0xc90] sm:$0xff]
  %v414 = vld [vmem:[%s1 + $0xc98] sm:$0xff]
  %v415 = vld [vmem:[%s1 + $0xca0] sm:$0xff]
  %v416 = vld [vmem:[%s1 + $0xca8] sm:$0xff]
  %v417 = vld [vmem:[%s1 + $0xcb0] sm:$0xff]
  %v418 = vld [vmem:[%s1 + $0xcb8] sm:$0xff]
  %v419 = vld [vmem:[%s1 + $0xcc0] sm:$0xff]
  %v420 = vld [vmem:[%s1 + $0xcc8] sm:$0xff]
  %v421 = vld [vmem:[%s1 + $0xcd0] sm:$0xff]
  %v422 = vld [vmem:[%s1 + $0xcd8] sm:$0xff]
  %v423 = vld [vmem:[%s1 + $0xce0] sm:$0xff]
  %v424 = vld [vmem:[%s1 + $0xce8] sm:$0xff]
  %v425 = vld [vmem:[%s1 + $0xcf0] sm:$0xff]
  %v426 = vld [vmem:[%s1 + $0xcf8] sm:$0xff]
  %v427 = vld [vmem:[%s1 + $0xd00] sm:$0xff]
  %v428 = vld [vmem:[%s1 + $0xd08] sm:$0xff]
  %v429 = vld [vmem:[%s1 + $0xd10] sm:$0xff]
  %v430 = vld [vmem:[%s1 + $0xd18] sm:$0xff]
  %v431 = vld [vmem:[%s1 + $0xd20] sm:$0xff]
  %v432 = vld [vmem:[%s1 + $0xd28] sm:$0xff]
  %v433 = vld [vmem:[%s1 + $0xd30] sm:$0xff]
  %v434 = vld [vmem:[%s1 + $0xd38] sm:$0xff]
  %v435 = vld [vmem:[%s1 + $0xd40] sm:$0xff]
  %v436 = vld [vmem:[%s1 + $0xd48] sm:$0xff]
  %v437 = vld [vmem:[%s1 + $0xd50] sm:$0xff]
  %v438 = vld [vmem:[%s1 + $0xd58] sm:$0xff]
  %v439 = vld [vmem:[%s1 + $0xd60] sm:$0xff]
  %v440 = vld [vmem:[%s1 + $0xd68] sm:$0xff]
  %v441 = vld [vmem:[%s1 + $0xd70] sm:$0xff]
  %v442 = vld [vmem:[%s1 + $0xd78] sm:$0xff]
  %v443 = vld [vmem:[%s1 + $0xd80] sm:$0xff]
  %v444 = vld [vmem:[%s1 + $0xd88] sm:$0xff]
  %v445 = vld [vmem:[%s1 + $0xd90] sm:$0xff]
  %v446 = vld [vmem:[%s1 + $0xd98] sm:$0xff]
  %v447 = vld [vmem:[%s1 + $0xda0] sm:$0xff]
  %v448 = vld [vmem:[%s1 + $0xda8] sm:$0xff]
  %v449 = vld [vmem:[%s1 + $0xdb0] sm:$0xff]
  %v450 = vld [vmem:[%s1 + $0xdb8] sm:$0xff]
  %v451 = vmax.f32 %v11, 0.0
  %v452 = vmax.f32 %v12, 0.0
  %v453 = vmax.f32 %v13, 0.0
  %v454 = vmax.f32 %v14, 0.0
  %v455 = vmax.f32 %v15, 0.0
  %v456 = vmax.f32 %v16, 0.0
  %v457 = vmax.f32 %v17, 0.0
  %v458 = vmax.f32 %v18, 0.0
  %v459 = vmax.f32 %v19, 0.0
  %v460 = vmax.f32 %v20, 0.0
  %v461 = vmax.f32 %v21, 0.0
  %v462 = vmax.f32 %v22, 0.0
  %v463 = vmax.f32 %v23, 0.0
  %v464 = vmax.f32 %v24, 0.0
  %v465 = vmax.f32 %v25, 0.0
  %v466 = vmax.f32 %v26, 0.0
  %v467 = vmax.f32 %v27, 0.0
  %v468 = vmax.f32 %v28, 0.0
  %v469 = vmax.f32 %v29, 0.0
  %v470 = vmax.f32 %v30, 0.0
  %v471 = vmax.f32 %v31, 0.0
  %v472 = vmax.f32 %v32, 0.0
  %v473 = vmax.f32 %v33, 0.0
  %v474 = vmax.f32 %v34, 0.0
  %v475 = vmax.f32 %v35, 0.0
  %v476 = vmax.f32 %v36, 0.0
  %v477 = vmax.f32 %v37, 0.0
  %v478 = vmax.f32 %v38, 0.0
  %v479 = vmax.f32 %v39, 0.0
  %v480 = vmax.f32 %v40, 0.0
  %v481 = vmax.f32 %v41, 0.0
  %v482 = vmax.f32 %v42, 0.0
  %v483 = vmax.f32 %v43, 0.0
  %v484 = vmax.f32 %v44, 0.0
  %v485 = vmax.f32 %v45, 0.0
  %v486 = vmax.f32 %v46, 0.0
  %v487 = vmax.f32 %v47, 0.0
  %v488 = vmax.f32 %v48, 0.0
  %v489 = vmax.f32 %v49, 0.0
  %v490 = vmax.f32 %v50, 0.0
  %v491 = vmax.f32 %v51, 0.0
  %v492 = vmax.f32 %v52, 0.0
  %v493 = vmax.f32 %v53, 0.0
  %v494 = vmax.f32 %v54, 0.0
  %v495 = vmax.f32 %v55, 0.0
  %v496 = vmax.f32 %v56, 0.0
  %v497 = vmax.f32 %v57, 0.0
  %v498 = vmax.f32 %v58, 0.0
  %v499 = vmax.f32 %v59, 0.0
  %v500 = vmax.f32 %v60, 0.0
  %v501 = vmax.f32 %v61, 0.0
  %v502 = vmax.f32 %v62, 0.0
  %v503 = vmax.f32 %v63, 0.0
  %v504 = vmax.f32 %v64, 0.0
  %v505 = vmax.f32 %v65, 0.0
  %v506 = vmax.f32 %v66, 0.0
  %v507 = vmax.f32 %v67, 0.0
  %v508 = vmax.f32 %v68, 0.0
  %v509 = vmax.f32 %v69, 0.0
  %v510 = vmax.f32 %v70, 0.0
  %v511 = vmax.f32 %v71, 0.0
  %v512 = vmax.f32 %v72, 0.0
  %v513 = vmax.f32 %v73, 0.0
  %v514 = vmax.f32 %v74, 0.0
  %v515 = vmax.f32 %v75, 0.0
  %v516 = vmax.f32 %v76, 0.0
  %v517 = vmax.f32 %v77, 0.0
  %v518 = vmax.f32 %v78, 0.0
  %v519 = vmax.f32 %v79, 0.0
  %v520 = vmax.f32 %v80, 0.0
  %v521 = vmax.f32 %v81, 0.0
  %v522 = vmax.f32 %v82, 0.0
  %v523 = vmax.f32 %v83, 0.0
  %v524 = vmax.f32 %v84, 0.0
  %v525 = vmax.f32 %v85, 0.0
  %v526 = vmax.f32 %v86, 0.0
  %v527 = vmax.f32 %v87, 0.0
  %v528 = vmax.f32 %v88, 0.0
  %v529 = vmax.f32 %v89, 0.0
  %v530 = vmax.f32 %v90, 0.0
  %v531 = vmax.f32 %v91, 0.0
  %v532 = vmax.f32 %v92, 0.0
  %v533 = vmax.f32 %v93, 0.0
  %v534 = vmax.f32 %v94, 0.0
  %v535 = vmax.f32 %v95, 0.0
  %v536 = vmax.f32 %v96, 0.0
  %v537 = vmax.f32 %v97, 0.0
  %v538 = vmax.f32 %v98, 0.0
  %v539 = vmax.f32 %v99, 0.0
  %v540 = vmax.f32 %v100, 0.0
  %v541 = vmax.f32 %v101, 0.0
  %v542 = vmax.f32 %v102, 0.0
  %v543 = vmax.f32 %v103, 0.0
  %v544 = vmax.f32 %v104, 0.0
  %v545 = vmax.f32 %v105, 0.0
  %v546 = vmax.f32 %v106, 0.0
  %v547 = vmax.f32 %v107, 0.0
  %v548 = vmax.f32 %v108, 0.0
  %v549 = vmax.f32 %v109, 0.0
  %v550 = vmax.f32 %v110, 0.0
  %v551 = vmax.f32 %v111, 0.0
  %v552 = vmax.f32 %v112, 0.0
  %v553 = vmax.f32 %v113, 0.0
  %v554 = vmax.f32 %v114, 0.0
  %v555 = vmax.f32 %v115, 0.0
  %v556 = vmax.f32 %v116, 0.0
  %v557 = vmax.f32 %v117, 0.0
  %v558 = vmax.f32 %v118, 0.0
  %v559 = vmax.f32 %v119, 0.0
  %v560 = vmax.f32 %v120, 0.0
  %v561 = vmax.f32 %v121, 0.0
  %v562 = vmax.f32 %v122, 0.0
  %v563 = vmax.f32 %v123, 0.0
  %v564 = vmax.f32 %v124, 0.0
  %v565 = vmax.f32 %v125, 0.0
  %v566 = vmax.f32 %v126, 0.0
  %v567 = vmax.f32 %v127, 0.0
  %v568 = vmax.f32 %v128, 0.0
  %v569 = vmax.f32 %v129, 0.0
  %v570 = vmax.f32 %v130, 0.0
  %v571 = vmax.f32 %v131, 0.0
  %v572 = vmax.f32 %v132, 0.0
  %v573 = vmax.f32 %v133, 0.0
  %v574 = vmax.f32 %v134, 0.0
  %v575 = vmax.f32 %v135, 0.0
  %v576 = vmax.f32 %v136, 0.0
  %v577 = vmax.f32 %v137, 0.0
  %v578 = vmax.f32 %v138, 0.0
  %v579 = vmax.f32 %v139, 0.0
  %v580 = vmax.f32 %v140, 0.0
  %v581 = vmax.f32 %v141, 0.0
  %v582 = vmax.f32 %v142, 0.0
  %v583 = vmax.f32 %v143, 0.0
  %v584 = vmax.f32 %v144, 0.0
  %v585 = vmax.f32 %v145, 0.0
  %v586 = vmax.f32 %v146, 0.0
  %v587 = vmax.f32 %v147, 0.0
  %v588 = vmax.f32 %v148, 0.0
  %v589 = vmax.f32 %v149, 0.0
  %v590 = vmax.f32 %v150, 0.0
  %v591 = vmax.f32 %v151, 0.0
  %v592 = vmax.f32 %v152, 0.0
  %v593 = vmax.f32 %v153, 0.0
  %v594 = vmax.f32 %v154, 0.0
  %v595 = vmax.f32 %v155, 0.0
  %v596 = vmax.f32 %v156, 0.0
  %v597 = vmax.f32 %v157, 0.0
  %v598 = vmax.f32 %v158, 0.0
  %v599 = vmax.f32 %v159, 0.0
  %v600 = vmax.f32 %v160, 0.0
  %v601 = vmax.f32 %v161, 0.0
  %v602 = vmax.f32 %v162, 0.0
  %v603 = vmax.f32 %v163, 0.0
  %v604 = vmax.f32 %v164, 0.0
  %v605 = vmax.f32 %v165, 0.0
  %v606 = vmax.f32 %v166, 0.0
  %v607 = vmax.f32 %v167, 0.0
  %v608 = vmax.f32 %v168, 0.0
  %v609 = vmax.f32 %v169, 0.0
  %v610 = vmax.f32 %v170, 0.0
  %v611 = vmax.f32 %v171, 0.0
  %v612 = vmax.f32 %v172, 0.0
  %v613 = vmax.f32 %v173, 0.0
  %v614 = vmax.f32 %v174, 0.0
  %v615 = vmax.f32 %v175, 0.0
  %v616 = vmax.f32 %v176, 0.0
  %v617 = vmax.f32 %v177, 0.0
  %v618 = vmax.f32 %v178, 0.0
  %v619 = vmax.f32 %v179, 0.0
  %v620 = vmax.f32 %v180, 0.0
  %v621 = vmax.f32 %v181, 0.0
  %v622 = vmax.f32 %v182, 0.0
  %v623 = vmax.f32 %v183, 0.0
  %v624 = vmax.f32 %v184, 0.0
  %v625 = vmax.f32 %v185, 0.0
  %v626 = vmax.f32 %v186, 0.0
  %v627 = vmax.f32 %v187, 0.0
  %v628 = vmax.f32 %v188, 0.0
  %v629 = vmax.f32 %v189, 0.0
  %v630 = vmax.f32 %v190, 0.0
  %v631 = vmax.f32 %v191, 0.0
  %v632 = vmax.f32 %v192, 0.0
  %v633 = vmax.f32 %v193, 0.0
  %v634 = vmax.f32 %v194, 0.0
  %v635 = vmax.f32 %v195, 0.0
  %v636 = vmax.f32 %v196, 0.0
  %v637 = vmax.f32 %v197, 0.0
  %v638 = vmax.f32 %v198, 0.0
  %v639 = vmax.f32 %v199, 0.0
  %v640 = vmax.f32 %v200, 0.0
  %v641 = vmax.f32 %v201, 0.0
  %v642 = vmax.f32 %v202, 0.0
  %v643 = vmax.f32 %v203, 0.0
  %v644 = vmax.f32 %v204, 0.0
  %v645 = vmax.f32 %v205, 0.0
  %v646 = vmax.f32 %v206, 0.0
  %v647 = vmax.f32 %v207, 0.0
  %v648 = vmax.f32 %v208, 0.0
  %v649 = vmax.f32 %v209, 0.0
  %v650 = vmax.f32 %v210, 0.0
  %v651 = vmax.f32 %v211, 0.0
  %v652 = vmax.f32 %v212, 0.0
  %v653 = vmax.f32 %v213, 0.0
  %v654 = vmax.f32 %v214, 0.0
  %v655 = vmax.f32 %v215, 0.0
  %v656 = vmax.f32 %v216, 0.0
  %v657 = vmax.f32 %v217, 0.0
  %v658 = vmax.f32 %v218, 0.0
  %v659 = vmax.f32 %v219, 0.0
  %v660 = vmax.f32 %v220, 0.0
  %v661 = vmax.f32 %v221, 0.0
  %v662 = vmax.f32 %v222, 0.0
  %v663 = vmax.f32 %v223, 0.0
  %v664 = vmax.f32 %v224, 0.0
  %v665 = vmax.f32 %v225, 0.0
  %v666 = vmax.f32 %v226, 0.0
  %v667 = vmax.f32 %v227, 0.0
  %v668 = vmax.f32 %v228, 0.0
  %v669 = vmax.f32 %v229, 0.0
  %v670 = vmax.f32 %v230, 0.0
  %v671 = vmax.f32 %v231, 0.0
  %v672 = vmax.f32 %v232, 0.0
  %v673 = vmax.f32 %v233, 0.0
  %v674 = vmax.f32 %v234, 0.0
  %v675 = vmax.f32 %v235, 0.0
  %v676 = vmax.f32 %v236, 0.0
  %v677 = vmax.f32 %v237, 0.0
  %v678 = vmax.f32 %v238, 0.0
  %v679 = vmax.f32 %v239, 0.0
  %v680 = vmax.f32 %v240, 0.0
  %v681 = vmax.f32 %v241, 0.0
  %v682 = vmax.f32 %v242, 0.0
  %v683 = vmax.f32 %v243, 0.0
  %v684 = vmax.f32 %v244, 0.0
  %v685 = vmax.f32 %v245, 0.0
  %v686 = vmax.f32 %v246, 0.0
  %v687 = vmax.f32 %v247, 0.0
  %v688 = vmax.f32 %v248, 0.0
  %v689 = vmax.f32 %v249, 0.0
  %v690 = vmax.f32 %v250, 0.0
  %v691 = vmax.f32 %v251, 0.0
  %v692 = vmax.f32 %v252, 0.0
  %v693 = vmax.f32 %v253, 0.0
  %v694 = vmax.f32 %v254, 0.0
  %v695 = vmax.f32 %v255, 0.0
  %v696 = vmax.f32 %v256, 0.0
  %v697 = vmax.f32 %v257, 0.0
  %v698 = vmax.f32 %v258, 0.0
  %v699 = vmax.f32 %v259, 0.0
  %v700 = vmax.f32 %v260, 0.0
  %v701 = vmax.f32 %v261, 0.0
  %v702 = vmax.f32 %v262, 0.0
  %v703 = vmax.f32 %v263, 0.0
  %v704 = vmax.f32 %v264, 0.0
  %v705 = vmax.f32 %v265, 0.0
  %v706 = vmax.f32 %v266, 0.0
  %v707 = vmax.f32 %v267, 0.0
  %v708 = vmax.f32 %v268, 0.0
  %v709 = vmax.f32 %v269, 0.0
  %v710 = vmax.f32 %v270, 0.0
  %v711 = vmax.f32 %v271, 0.0
  %v712 = vmax.f32 %v272, 0.0
  %v713 = vmax.f32 %v273, 0.0
  %v714 = vmax.f32 %v274, 0.0
  %v715 = vmax.f32 %v275, 0.0
  %v716 = vmax.f32 %v276, 0.0
  %v717 = vmax.f32 %v277, 0.0
  %v718 = vmax.f32 %v278, 0.0
  %v719 = vmax.f32 %v279, 0.0
  %v720 = vmax.f32 %v280, 0.0
  %v721 = vmax.f32 %v281, 0.0
  %v722 = vmax.f32 %v282, 0.0
  %v723 = vmax.f32 %v283, 0.0
  %v724 = vmax.f32 %v284, 0.0
  %v725 = vmax.f32 %v285, 0.0
  %v726 = vmax.f32 %v286, 0.0
  %v727 = vmax.f32 %v287, 0.0
  %v728 = vmax.f32 %v288, 0.0
  %v729 = vmax.f32 %v289, 0.0
  %v730 = vmax.f32 %v290, 0.0
  %v731 = vmax.f32 %v291, 0.0
  %v732 = vmax.f32 %v292, 0.0
  %v733 = vmax.f32 %v293, 0.0
  %v734 = vmax.f32 %v294, 0.0
  %v735 = vmax.f32 %v295, 0.0
  %v736 = vmax.f32 %v296, 0.0
  %v737 = vmax.f32 %v297, 0.0
  %v738 = vmax.f32 %v298, 0.0
  %v739 = vmax.f32 %v299, 0.0
  %v740 = vmax.f32 %v300, 0.0
  %v741 = vmax.f32 %v301, 0.0
  %v742 = vmax.f32 %v302, 0.0
  %v743 = vmax.f32 %v303, 0.0
  %v744 = vmax.f32 %v304, 0.0
  %v745 = vmax.f32 %v305, 0.0
  %v746 = vmax.f32 %v306, 0.0
  %v747 = vmax.f32 %v307, 0.0
  %v748 = vmax.f32 %v308, 0.0
  %v749 = vmax.f32 %v309, 0.0
  %v750 = vmax.f32 %v310, 0.0
  %v751 = vmax.f32 %v311, 0.0
  %v752 = vmax.f32 %v312, 0.0
  %v753 = vmax.f32 %v313, 0.0
  %v754 = vmax.f32 %v314, 0.0
  %v755 = vmax.f32 %v315, 0.0
  %v756 = vmax.f32 %v316, 0.0
  %v757 = vmax.f32 %v317, 0.0
  %v758 = vmax.f32 %v318, 0.0
  %v759 = vmax.f32 %v319, 0.0
  %v760 = vmax.f32 %v320, 0.0
  %v761 = vmax.f32 %v321, 0.0
  %v762 = vmax.f32 %v322, 0.0
  %v763 = vmax.f32 %v323, 0.0
  %v764 = vmax.f32 %v324, 0.0
  %v765 = vmax.f32 %v325, 0.0
  %v766 = vmax.f32 %v326, 0.0
  %v767 = vmax.f32 %v327, 0.0
  %v768 = vmax.f32 %v328, 0.0
  %v769 = vmax.f32 %v329, 0.0
  %v770 = vmax.f32 %v330, 0.0
  %v771 = vmax.f32 %v331, 0.0
  %v772 = vmax.f32 %v332, 0.0
  %v773 = vmax.f32 %v333, 0.0
  %v774 = vmax.f32 %v334, 0.0
  %v775 = vmax.f32 %v335, 0.0
  %v776 = vmax.f32 %v336, 0.0
  %v777 = vmax.f32 %v337, 0.0
  %v778 = vmax.f32 %v338, 0.0
  %v779 = vmax.f32 %v339, 0.0
  %v780 = vmax.f32 %v340, 0.0
  %v781 = vmax.f32 %v341, 0.0
  %v782 = vmax.f32 %v342, 0.0
  %v783 = vmax.f32 %v343, 0.0
  %v784 = vmax.f32 %v344, 0.0
  %v785 = vmax.f32 %v345, 0.0
  %v786 = vmax.f32 %v346, 0.0
  %v787 = vmax.f32 %v347, 0.0
  %v788 = vmax.f32 %v348, 0.0
  %v789 = vmax.f32 %v349, 0.0
  %v790 = vmax.f32 %v350, 0.0
  %v791 = vmax.f32 %v351, 0.0
  %v792 = vmax.f32 %v352, 0.0
  %v793 = vmax.f32 %v353, 0.0
  %v794 = vmax.f32 %v354, 0.0
  %v795 = vmax.f32 %v355, 0.0
  %v796 = vmax.f32 %v356, 0.0
  %v797 = vmax.f32 %v357, 0.0
  %v798 = vmax.f32 %v358, 0.0
  %v799 = vmax.f32 %v359, 0.0
  %v800 = vmax.f32 %v360, 0.0
  %v801 = vmax.f32 %v361, 0.0
  %v802 = vmax.f32 %v362, 0.0
  %v803 = vmax.f32 %v363, 0.0
  %v804 = vmax.f32 %v364, 0.0
  %v805 = vmax.f32 %v365, 0.0
  %v806 = vmax.f32 %v366, 0.0
  %v807 = vmax.f32 %v367, 0.0
  %v808 = vmax.f32 %v368, 0.0
  %v809 = vmax.f32 %v369, 0.0
  %v810 = vmax.f32 %v370, 0.0
  %v811 = vmax.f32 %v371, 0.0
  %v812 = vmax.f32 %v372, 0.0
  %v813 = vmax.f32 %v373, 0.0
  %v814 = vmax.f32 %v374, 0.0
  %v815 = vmax.f32 %v375, 0.0
  %v816 = vmax.f32 %v376, 0.0
  %v817 = vmax.f32 %v377, 0.0
  %v818 = vmax.f32 %v378, 0.0
  %v819 = vmax.f32 %v379, 0.0
  %v820 = vmax.f32 %v380, 0.0
  %v821 = vmax.f32 %v381, 0.0
  %v822 = vmax.f32 %v382, 0.0
  %v823 = vmax.f32 %v383, 0.0
  %v824 = vmax.f32 %v384, 0.0
  %v825 = vmax.f32 %v385, 0.0
  %v826 = vmax.f32 %v386, 0.0
  %v827 = vmax.f32 %v387, 0.0
  %v828 = vmax.f32 %v388, 0.0
  %v829 = vmax.f32 %v389, 0.0
  %v830 = vmax.f32 %v390, 0.0
  %v831 = vmax.f32 %v391, 0.0
  %v832 = vmax.f32 %v392, 0.0
  %v833 = vmax.f32 %v393, 0.0
  %v834 = vmax.f32 %v394, 0.0
  %v835 = vmax.f32 %v395, 0.0
  %v836 = vmax.f32 %v396, 0.0
  %v837 = vmax.f32 %v397, 0.0
  %v838 = vmax.f32 %v398, 0.0
  %v839 = vmax.f32 %v399, 0.0
  %v840 = vmax.f32 %v400, 0.0
  %v841 = vmax.f32 %v401, 0.0
  %v842 = vmax.f32 %v402, 0.0
  %v843 = vmax.f32 %v403, 0.0
  %v844 = vmax.f32 %v404, 0.0
  %v845 = vmax.f32 %v405, 0.0
  %v846 = vmax.f32 %v406, 0.0
  %v847 = vmax.f32 %v407, 0.0
  %v848 = vmax.f32 %v408, 0.0
  %v849 = vmax.f32 %v409, 0.0
  %v850 = vmax.f32 %v410, 0.0
  %v851 = vmax.f32 %v411, 0.0
  %v852 = vmax.f32 %v412, 0.0
  %v853 = vmax.f32 %v413, 0.0
  %v854 = vmax.f32 %v414, 0.0
  %v855 = vmax.f32 %v415, 0.0
  %v856 = vmax.f32 %v416, 0.0
  %v857 = vmax.f32 %v417, 0.0
  %v858 = vmax.f32 %v418, 0.0
  %v859 = vmax.f32 %v419, 0.0
  %v860 = vmax.f32 %v420, 0.0
  %v861 = vmax.f32 %v421, 0.0
  %v862 = vmax.f32 %v422, 0.0
  %v863 = vmax.f32 %v423, 0.0
  %v864 = vmax.f32 %v424, 0.0
  %v865 = vmax.f32 %v425, 0.0
  %v866 = vmax.f32 %v426, 0.0
  %v867 = vmax.f32 %v427, 0.0
  %v868 = vmax.f32 %v428, 0.0
  %v869 = vmax.f32 %v429, 0.0
  %v870 = vmax.f32 %v430, 0.0
  %v871 = vmax.f32 %v431, 0.0
  %v872 = vmax.f32 %v432, 0.0
  %v873 = vmax.f32 %v433, 0.0
  %v874 = vmax.f32 %v434, 0.0
  %v875 = vmax.f32 %v435, 0.0
  %v876 = vmax.f32 %v436, 0.0
  %v877 = vmax.f32 %v437, 0.0
  %v878 = vmax.f32 %v438, 0.0
  %v879 = vmax.f32 %v439, 0.0
  %v880 = vmax.f32 %v440, 0.0
  %v881 = vmax.f32 %v441, 0.0
  %v882 = vmax.f32 %v442, 0.0
  %v883 = vmax.f32 %v443, 0.0
  %v884 = vmax.f32 %v444, 0.0
  %v885 = vmax.f32 %v445, 0.0
  %v886 = vmax.f32 %v446, 0.0
  %v887 = vmax.f32 %v447, 0.0
  %v888 = vmax.f32 %v448, 0.0
  %v889 = vmax.f32 %v449, 0.0
  %v890 = vmax.f32 %v450, 0.0
  %v891 = vld [vmem:[%s0] sm:$0xff]
  %v892 = vld [vmem:[%s0 + $0x8] sm:$0xff]
  %v893 = vld [vmem:[%s0 + $0x10] sm:$0xff]
  %v894 = vld [vmem:[%s0 + $0x18] sm:$0xff]
  %v895 = vld [vmem:[%s0 + $0x20] sm:$0xff]
  %v896 = vld [vmem:[%s0 + $0x28] sm:$0xff]
  %v897 = vld [vmem:[%s0 + $0x30] sm:$0xff]
  %v898 = vld [vmem:[%s0 + $0x38] sm:$0xff]
  %v899 = vld [vmem:[%s0 + $0x40] sm:$0xff]
  %v900 = vld [vmem:[%s0 + $0x48] sm:$0xff]
  %v901 = vld [vmem:[%s0 + $0x50] sm:$0xff]
  %v902 = vld [vmem:[%s0 + $0x58] sm:$0xff]
  %v903 = vld [vmem:[%s0 + $0x60] sm:$0xff]
  %v904 = vld [vmem:[%s0 + $0x68] sm:$0xff]
  %v905 = vld [vmem:[%s0 + $0x70] sm:$0xff]
  %v906 = vld [vmem:[%s0 + $0x78] sm:$0xff]
  %v907 = vld [vmem:[%s0 + $0x80] sm:$0xff]
  %v908 = vld [vmem:[%s0 + $0x88] sm:$0xff]
  %v909 = vld [vmem:[%s0 + $0x90] sm:$0xff]
  %v910 = vld [vmem:[%s0 + $0x98] sm:$0xff]
  %v911 = vld [vmem:[%s0 + $0xa0] sm:$0xff]
  %v912 = vld [vmem:[%s0 + $0xa8] sm:$0xff]
  %v913 = vld [vmem:[%s0 + $0xb0] sm:$0xff]
  %v914 = vld [vmem:[%s0 + $0xb8] sm:$0xff]
  %v915 = vld [vmem:[%s0 + $0xc0] sm:$0xff]
  %v916 = vld [vmem:[%s0 + $0xc8] sm:$0xff]
  %v917 = vld [vmem:[%s0 + $0xd0] sm:$0xff]
  %v918 = vld [vmem:[%s0 + $0xd8] sm:$0xff]
  %v919 = vld [vmem:[%s0 + $0xe0] sm:$0xff]
  %v920 = vld [vmem:[%s0 + $0xe8] sm:$0xff]
  %v921 = vld [vmem:[%s0 + $0xf0] sm:$0xff]
  %v922 = vld [vmem:[%s0 + $0xf8] sm:$0xff]
  %v923 = vld [vmem:[%s0 + $0x100] sm:$0xff]
  %v924 = vld [vmem:[%s0 + $0x108] sm:$0xff]
  %v925 = vld [vmem:[%s0 + $0x110] sm:$0xff]
  %v926 = vld [vmem:[%s0 + $0x118] sm:$0xff]
  %v927 = vld [vmem:[%s0 + $0x120] sm:$0xff]
  %v928 = vld [vmem:[%s0 + $0x128] sm:$0xff]
  %v929 = vld [vmem:[%s0 + $0x130] sm:$0xff]
  %v930 = vld [vmem:[%s0 + $0x138] sm:$0xff]
  %v931 = vld [vmem:[%s0 + $0x140] sm:$0xff]
  %v932 = vld [vmem:[%s0 + $0x148] sm:$0xff]
  %v933 = vld [vmem:[%s0 + $0x150] sm:$0xff]
  %v934 = vld [vmem:[%s0 + $0x158] sm:$0xff]
  %v935 = vld [vmem:[%s0 + $0x160] sm:$0xff]
  %v936 = vld [vmem:[%s0 + $0x168] sm:$0xff]
  %v937 = vld [vmem:[%s0 + $0x170] sm:$0xff]
  %v938 = vld [vmem:[%s0 + $0x178] sm:$0xff]
  %v939 = vld [vmem:[%s0 + $0x180] sm:$0xff]
  %v940 = vld [vmem:[%s0 + $0x188] sm:$0xff]
  %v941 = vld [vmem:[%s0 + $0x190] sm:$0xff]
  %v942 = vld [vmem:[%s0 + $0x198] sm:$0xff]
  %v943 = vld [vmem:[%s0 + $0x1a0] sm:$0xff]
  %v944 = vld [vmem:[%s0 + $0x1a8] sm:$0xff]
  %v945 = vld [vmem:[%s0 + $0x1b0] sm:$0xff]
  %v946 = vld [vmem:[%s0 + $0x1b8] sm:$0xff]
  %v947 = vld [vmem:[%s0 + $0x1c0] sm:$0xff]
  %v948 = vld [vmem:[%s0 + $0x1c8] sm:$0xff]
  %v949 = vld [vmem:[%s0 + $0x1d0] sm:$0xff]
  %v950 = vld [vmem:[%s0 + $0x1d8] sm:$0xff]
  %v951 = vld [vmem:[%s0 + $0x1e0] sm:$0xff]
  %v952 = vld [vmem:[%s0 + $0x1e8] sm:$0xff]
  %v953 = vld [vmem:[%s0 + $0x1f0] sm:$0xff]
  %v954 = vld [vmem:[%s0 + $0x1f8] sm:$0xff]
  %v955 = vld [vmem:[%s0 + $0x200] sm:$0xff]
  %v956 = vld [vmem:[%s0 + $0x208] sm:$0xff]
  %v957 = vld [vmem:[%s0 + $0x210] sm:$0xff]
  %v958 = vld [vmem:[%s0 + $0x218] sm:$0xff]
  %v959 = vld [vmem:[%s0 + $0x220] sm:$0xff]
  %v960 = vld [vmem:[%s0 + $0x228] sm:$0xff]
  %v961 = vld [vmem:[%s0 + $0x230] sm:$0xff]
  %v962 = vld [vmem:[%s0 + $0x238] sm:$0xff]
  %v963 = vld [vmem:[%s0 + $0x240] sm:$0xff]
  %v964 = vld [vmem:[%s0 + $0x248] sm:$0xff]
  %v965 = vld [vmem:[%s0 + $0x250] sm:$0xff]
  %v966 = vld [vmem:[%s0 + $0x258] sm:$0xff]
  %v967 = vld [vmem:[%s0 + $0x260] sm:$0xff]
  %v968 = vld [vmem:[%s0 + $0x268] sm:$0xff]
  %v969 = vld [vmem:[%s0 + $0x270] sm:$0xff]
  %v970 = vld [vmem:[%s0 + $0x278] sm:$0xff]
  %v971 = vld [vmem:[%s0 + $0x280] sm:$0xff]
  %v972 = vld [vmem:[%s0 + $0x288] sm:$0xff]
  %v973 = vld [vmem:[%s0 + $0x290] sm:$0xff]
  %v974 = vld [vmem:[%s0 + $0x298] sm:$0xff]
  %v975 = vld [vmem:[%s0 + $0x2a0] sm:$0xff]
  %v976 = vld [vmem:[%s0 + $0x2a8] sm:$0xff]
  %v977 = vld [vmem:[%s0 + $0x2b0] sm:$0xff]
  %v978 = vld [vmem:[%s0 + $0x2b8] sm:$0xff]
  %v979 = vld [vmem:[%s0 + $0x2c0] sm:$0xff]
  %v980 = vld [vmem:[%s0 + $0x2c8] sm:$0xff]
  %v981 = vld [vmem:[%s0 + $0x2d0] sm:$0xff]
  %v982 = vld [vmem:[%s0 + $0x2d8] sm:$0xff]
  %v983 = vld [vmem:[%s0 + $0x2e0] sm:$0xff]
  %v984 = vld [vmem:[%s0 + $0x2e8] sm:$0xff]
  %v985 = vld [vmem:[%s0 + $0x2f0] sm:$0xff]
  %v986 = vld [vmem:[%s0 + $0x2f8] sm:$0xff]
  %v987 = vld [vmem:[%s0 + $0x300] sm:$0xff]
  %v988 = vld [vmem:[%s0 + $0x308] sm:$0xff]
  %v989 = vld [vmem:[%s0 + $0x310] sm:$0xff]
  %v990 = vld [vmem:[%s0 + $0x318] sm:$0xff]
  %v991 = vld [vmem:[%s0 + $0x320] sm:$0xff]
  %v992 = vld [vmem:[%s0 + $0x328] sm:$0xff]
  %v993 = vld [vmem:[%s0 + $0x330] sm:$0xff]
  %v994 = vld [vmem:[%s0 + $0x338] sm:$0xff]
  %v995 = vld [vmem:[%s0 + $0x340] sm:$0xff]
  %v996 = vld [vmem:[%s0 + $0x348] sm:$0xff]
  %v997 = vld [vmem:[%s0 + $0x350] sm:$0xff]
  %v998 = vld [vmem:[%s0 + $0x358] sm:$0xff]
  %v999 = vld [vmem:[%s0 + $0x360] sm:$0xff]
  %v1000 = vld [vmem:[%s0 + $0x368] sm:$0xff]
  %v1001 = vld [vmem:[%s0 + $0x370] sm:$0xff]
  %v1002 = vld [vmem:[%s0 + $0x378] sm:$0xff]
  %v1003 = vld [vmem:[%s0 + $0x380] sm:$0xff]
  %v1004 = vld [vmem:[%s0 + $0x388] sm:$0xff]
  %v1005 = vld [vmem:[%s0 + $0x390] sm:$0xff]
  %v1006 = vld [vmem:[%s0 + $0x398] sm:$0xff]
  %v1007 = vld [vmem:[%s0 + $0x3a0] sm:$0xff]
  %v1008 = vld [vmem:[%s0 + $0x3a8] sm:$0xff]
  %v1009 = vld [vmem:[%s0 + $0x3b0] sm:$0xff]
  %v1010 = vld [vmem:[%s0 + $0x3b8] sm:$0xff]
  %v1011 = vld [vmem:[%s0 + $0x3c0] sm:$0xff]
  %v1012 = vld [vmem:[%s0 + $0x3c8] sm:$0xff]
  %v1013 = vld [vmem:[%s0 + $0x3d0] sm:$0xff]
  %v1014 = vld [vmem:[%s0 + $0x3d8] sm:$0xff]
  %v1015 = vld [vmem:[%s0 + $0x3e0] sm:$0xff]
  %v1016 = vld [vmem:[%s0 + $0x3e8] sm:$0xff]
  %v1017 = vld [vmem:[%s0 + $0x3f0] sm:$0xff]
  %v1018 = vld [vmem:[%s0 + $0x3f8] sm:$0xff]
  %v1019 = vld [vmem:[%s0 + $0x400] sm:$0xff]
  %v1020 = vld [vmem:[%s0 + $0x408] sm:$0xff]
  %v1021 = vld [vmem:[%s0 + $0x410] sm:$0xff]
  %v1022 = vld [vmem:[%s0 + $0x418] sm:$0xff]
  %v1023 = vld [vmem:[%s0 + $0x420] sm:$0xff]
  %v1024 = vld [vmem:[%s0 + $0x428] sm:$0xff]
  %v1025 = vld [vmem:[%s0 + $0x430] sm:$0xff]
  %v1026 = vld [vmem:[%s0 + $0x438] sm:$0xff]
  %v1027 = vld [vmem:[%s0 + $0x440] sm:$0xff]
  %v1028 = vld [vmem:[%s0 + $0x448] sm:$0xff]
  %v1029 = vld [vmem:[%s0 + $0x450] sm:$0xff]
  %v1030 = vld [vmem:[%s0 + $0x458] sm:$0xff]
  %v1031 = vld [vmem:[%s0 + $0x460] sm:$0xff]
  %v1032 = vld [vmem:[%s0 + $0x468] sm:$0xff]
  %v1033 = vld [vmem:[%s0 + $0x470] sm:$0xff]
  %v1034 = vld [vmem:[%s0 + $0x478] sm:$0xff]
  %v1035 = vld [vmem:[%s0 + $0x480] sm:$0xff]
  %v1036 = vld [vmem:[%s0 + $0x488] sm:$0xff]
  %v1037 = vld [vmem:[%s0 + $0x490] sm:$0xff]
  %v1038 = vld [vmem:[%s0 + $0x498] sm:$0xff]
  %v1039 = vld [vmem:[%s0 + $0x4a0] sm:$0xff]
  %v1040 = vld [vmem:[%s0 + $0x4a8] sm:$0xff]
  %v1041 = vld [vmem:[%s0 + $0x4b0] sm:$0xff]
  %v1042 = vld [vmem:[%s0 + $0x4b8] sm:$0xff]
  %v1043 = vld [vmem:[%s0 + $0x4c0] sm:$0xff]
  %v1044 = vld [vmem:[%s0 + $0x4c8] sm:$0xff]
  %v1045 = vld [vmem:[%s0 + $0x4d0] sm:$0xff]
  %v1046 = vld [vmem:[%s0 + $0x4d8] sm:$0xff]
  %v1047 = vld [vmem:[%s0 + $0x4e0] sm:$0xff]
  %v1048 = vld [vmem:[%s0 + $0x4e8] sm:$0xff]
  %v1049 = vld [vmem:[%s0 + $0x4f0] sm:$0xff]
  %v1050 = vld [vmem:[%s0 + $0x4f8] sm:$0xff]
  %v1051 = vld [vmem:[%s0 + $0x500] sm:$0xff]
  %v1052 = vld [vmem:[%s0 + $0x508] sm:$0xff]
  %v1053 = vld [vmem:[%s0 + $0x510] sm:$0xff]
  %v1054 = vld [vmem:[%s0 + $0x518] sm:$0xff]
  %v1055 = vld [vmem:[%s0 + $0x520] sm:$0xff]
  %v1056 = vld [vmem:[%s0 + $0x528] sm:$0xff]
  %v1057 = vld [vmem:[%s0 + $0x530] sm:$0xff]
  %v1058 = vld [vmem:[%s0 + $0x538] sm:$0xff]
  %v1059 = vld [vmem:[%s0 + $0x540] sm:$0xff]
  %v1060 = vld [vmem:[%s0 + $0x548] sm:$0xff]
  %v1061 = vld [vmem:[%s0 + $0x550] sm:$0xff]
  %v1062 = vld [vmem:[%s0 + $0x558] sm:$0xff]
  %v1063 = vld [vmem:[%s0 + $0x560] sm:$0xff]
  %v1064 = vld [vmem:[%s0 + $0x568] sm:$0xff]
  %v1065 = vld [vmem:[%s0 + $0x570] sm:$0xff]
  %v1066 = vld [vmem:[%s0 + $0x578] sm:$0xff]
  %v1067 = vld [vmem:[%s0 + $0x580] sm:$0xff]
  %v1068 = vld [vmem:[%s0 + $0x588] sm:$0xff]
  %v1069 = vld [vmem:[%s0 + $0x590] sm:$0xff]
  %v1070 = vld [vmem:[%s0 + $0x598] sm:$0xff]
  %v1071 = vld [vmem:[%s0 + $0x5a0] sm:$0xff]
  %v1072 = vld [vmem:[%s0 + $0x5a8] sm:$0xff]
  %v1073 = vld [vmem:[%s0 + $0x5b0] sm:$0xff]
  %v1074 = vld [vmem:[%s0 + $0x5b8] sm:$0xff]
  %v1075 = vld [vmem:[%s0 + $0x5c0] sm:$0xff]
  %v1076 = vld [vmem:[%s0 + $0x5c8] sm:$0xff]
  %v1077 = vld [vmem:[%s0 + $0x5d0] sm:$0xff]
  %v1078 = vld [vmem:[%s0 + $0x5d8] sm:$0xff]
  %v1079 = vld [vmem:[%s0 + $0x5e0] sm:$0xff]
  %v1080 = vld [vmem:[%s0 + $0x5e8] sm:$0xff]
  %v1081 = vld [vmem:[%s0 + $0x5f0] sm:$0xff]
  %v1082 = vld [vmem:[%s0 + $0x5f8] sm:$0xff]
  %v1083 = vld [vmem:[%s0 + $0x600] sm:$0xff]
  %v1084 = vld [vmem:[%s0 + $0x608] sm:$0xff]
  %v1085 = vld [vmem:[%s0 + $0x610] sm:$0xff]
  %v1086 = vld [vmem:[%s0 + $0x618] sm:$0xff]
  %v1087 = vld [vmem:[%s0 + $0x620] sm:$0xff]
  %v1088 = vld [vmem:[%s0 + $0x628] sm:$0xff]
  %v1089 = vld [vmem:[%s0 + $0x630] sm:$0xff]
  %v1090 = vld [vmem:[%s0 + $0x638] sm:$0xff]
  %v1091 = vld [vmem:[%s0 + $0x640] sm:$0xff]
  %v1092 = vld [vmem:[%s0 + $0x648] sm:$0xff]
  %v1093 = vld [vmem:[%s0 + $0x650] sm:$0xff]
  %v1094 = vld [vmem:[%s0 + $0x658] sm:$0xff]
  %v1095 = vld [vmem:[%s0 + $0x660] sm:$0xff]
  %v1096 = vld [vmem:[%s0 + $0x668] sm:$0xff]
  %v1097 = vld [vmem:[%s0 + $0x670] sm:$0xff]
  %v1098 = vld [vmem:[%s0 + $0x678] sm:$0xff]
  %v1099 = vld [vmem:[%s0 + $0x680] sm:$0xff]
  %v1100 = vld [vmem:[%s0 + $0x688] sm:$0xff]
  %v1101 = vld [vmem:[%s0 + $0x690] sm:$0xff]
  %v1102 = vld [vmem:[%s0 + $0x698] sm:$0xff]
  %v1103 = vld [vmem:[%s0 + $0x6a0] sm:$0xff]
  %v1104 = vld [vmem:[%s0 + $0x6a8] sm:$0xff]
  %v1105 = vld [vmem:[%s0 + $0x6b0] sm:$0xff]
  %v1106 = vld [vmem:[%s0 + $0x6b8] sm:$0xff]
  %v1107 = vld [vmem:[%s0 + $0x6c0] sm:$0xff]
  %v1108 = vld [vmem:[%s0 + $0x6c8] sm:$0xff]
  %v1109 = vld [vmem:[%s0 + $0x6d0] sm:$0xff]
  %v1110 = vld [vmem:[%s0 + $0x6d8] sm:$0xff]
  %1111 = vxpose.xlu0.b32.start [1/16] %v891, 128
  %1112 = vxpose.xlu0.b32.cont [2/16] %v892, 128
  %1113 = vxpose.xlu0.b32.cont [3/16] %v893, 128
  %1114 = vxpose.xlu0.b32.cont [4/16] %v894, 128
  %1115 = vxpose.xlu0.b32.cont [5/16] %v895, 128
  %1116 = vxpose.xlu0.b32.cont [6/16] %v896, 128
  %1117 = vxpose.xlu0.b32.cont [7/16] %v897, 128
  %1118 = vxpose.xlu0.b32.cont [8/16] %v898, 128
  %1119 = vxpose.xlu0.b32.cont [9/16] %v899, 128
  %1120 = vxpose.xlu0.b32.cont [10/16] %v900, 128
  %1121 = vxpose.xlu0.b32.cont [11/16] %v901, 128
  %1122 = vxpose.xlu0.b32.cont [12/16] %v902, 128
  %1123 = vxpose.xlu0.b32.cont [13/16] %v903, 128
  %1124 = vxpose.xlu0.b32.cont [14/16] %v904, 128
  %1125 = vxpose.xlu0.b32.cont [15/16] %v905, 128
  %1126 = vxpose.xlu0.b32.end [16/16] %v906, 128
  %v1127 = vpop.trf.xlu0
  %v1128 = vpop.trf.xlu0
  %v1129 = vpop.trf.xlu0
  %v1130 = vpop.trf.xlu0
  %v1131 = vpop.trf.xlu0
  %v1132 = vpop.trf.xlu0
  %v1133 = vpop.trf.xlu0
  %v1134 = vpop.trf.xlu0
  %v1135 = vpop.trf.xlu0
  %v1136 = vpop.trf.xlu0
  %v1137 = vpop.trf.xlu0
  %v1138 = vpop.trf.xlu0
  %v1139 = vpop.trf.xlu0
  %v1140 = vpop.trf.xlu0
  %v1141 = vpop.trf.xlu0
  %v1142 = vpop.trf.xlu0
  %1143 = vxpose.xlu0.b32.start [1/16] %v907, 128
  %1144 = vxpose.xlu0.b32.cont [2/16] %v908, 128
  %1145 = vxpose.xlu0.b32.cont [3/16] %v909, 128
  %1146 = vxpose.xlu0.b32.cont [4/16] %v910, 128
  %1147 = vxpose.xlu0.b32.cont [5/16] %v911, 128
  %1148 = vxpose.xlu0.b32.cont [6/16] %v912, 128
  %1149 = vxpose.xlu0.b32.cont [7/16] %v913, 128
  %1150 = vxpose.xlu0.b32.cont [8/16] %v914, 128
  %1151 = vxpose.xlu0.b32.cont [9/16] %v915, 128
  %1152 = vxpose.xlu0.b32.cont [10/16] %v916, 128
  %1153 = vxpose.xlu0.b32.cont [11/16] %v917, 128
  %1154 = vxpose.xlu0.b32.cont [12/16] %v918, 128
  %1155 = vxpose.xlu0.b32.cont [13/16] %v919, 128
  %1156 = vxpose.xlu0.b32.cont [14/16] %v920, 128
  %1157 = vxpose.xlu0.b32.cont [15/16] %v921, 128
  %1158 = vxpose.xlu0.b32.end [16/16] %v922, 128
  %v1159 = vpop.trf.xlu0
  %v1160 = vpop.trf.xlu0
  %v1161 = vpop.trf.xlu0
  %v1162 = vpop.trf.xlu0
  %v1163 = vpop.trf.xlu0
  %v1164 = vpop.trf.xlu0
  %v1165 = vpop.trf.xlu0
  %v1166 = vpop.trf.xlu0
  %v1167 = vpop.trf.xlu0
  %v1168 = vpop.trf.xlu0
  %v1169 = vpop.trf.xlu0
  %v1170 = vpop.trf.xlu0
  %v1171 = vpop.trf.xlu0
  %v1172 = vpop.trf.xlu0
  %v1173 = vpop.trf.xlu0
  %v1174 = vpop.trf.xlu0
  %1175 = vxpose.xlu0.b32.start [1/16] %v923, 128
  %1176 = vxpose.xlu0.b32.cont [2/16] %v924, 128
  %1177 = vxpose.xlu0.b32.cont [3/16] %v925, 128
  %1178 = vxpose.xlu0.b32.cont [4/16] %v926, 128
  %1179 = vxpose.xlu0.b32.cont [5/16] %v927, 128
  %1180 = vxpose.xlu0.b32.cont [6/16] %v928, 128
  %1181 = vxpose.xlu0.b32.cont [7/16] %v929, 128
  %1182 = vxpose.xlu0.b32.cont [8/16] %v930, 128
  %1183 = vxpose.xlu0.b32.cont [9/16] %v931, 128
  %1184 = vxpose.xlu0.b32.cont [10/16] %v932, 128
  %1185 = vxpose.xlu0.b32.cont [11/16] %v933, 128
  %1186 = vxpose.xlu0.b32.cont [12/16] %v934, 128
  %1187 = vxpose.xlu0.b32.cont [13/16] %v935, 128
  %1188 = vxpose.xlu0.b32.cont [14/16] %v936, 128
  %1189 = vxpose.xlu0.b32.cont [15/16] %v937, 128
  %1190 = vxpose.xlu0.b32.end [16/16] %v938, 128
  %v1191 = vpop.trf.xlu0
  %v1192 = vpop.trf.xlu0
  %v1193 = vpop.trf.xlu0
  %v1194 = vpop.trf.xlu0
  %v1195 = vpop.trf.xlu0
  %v1196 = vpop.trf.xlu0
  %v1197 = vpop.trf.xlu0
  %v1198 = vpop.trf.xlu0
  %v1199 = vpop.trf.xlu0
  %v1200 = vpop.trf.xlu0
  %v1201 = vpop.trf.xlu0
  %v1202 = vpop.trf.xlu0
  %v1203 = vpop.trf.xlu0
  %v1204 = vpop.trf.xlu0
  %v1205 = vpop.trf.xlu0
  %v1206 = vpop.trf.xlu0
  %1207 = vxpose.xlu0.b32.start [1/16] %v939, 128
  %1208 = vxpose.xlu0.b32.cont [2/16] %v940, 128
  %1209 = vxpose.xlu0.b32.cont [3/16] %v941, 128
  %1210 = vxpose.xlu0.b32.cont [4/16] %v942, 128
  %1211 = vxpose.xlu0.b32.cont [5/16] %v943, 128
  %1212 = vxpose.xlu0.b32.cont [6/16] %v944, 128
  %1213 = vxpose.xlu0.b32.cont [7/16] %v945, 128
  %1214 = vxpose.xlu0.b32.cont [8/16] %v946, 128
  %1215 = vxpose.xlu0.b32.cont [9/16] %v947, 128
  %1216 = vxpose.xlu0.b32.cont [10/16] %v948, 128
  %1217 = vxpose.xlu0.b32.cont [11/16] %v949, 128
  %1218 = vxpose.xlu0.b32.cont [12/16] %v950, 128
  %1219 = vxpose.xlu0.b32.cont [13/16] %v951, 128
  %1220 = vxpose.xlu0.b32.cont [14/16] %v952, 128
  %1221 = vxpose.xlu0.b32.cont [15/16] %v953, 128
  %1222 = vxpose.xlu0.b32.end [16/16] %v954, 128
  %v1223 = vpop.trf.xlu0
  %v1224 = vpop.trf.xlu0
  %v1225 = vpop.trf.xlu0
  %v1226 = vpop.trf.xlu0
  %v1227 = vpop.trf.xlu0
  %v1228 = vpop.trf.xlu0
  %v1229 = vpop.trf.xlu0
  %v1230 = vpop.trf.xlu0
  %v1231 = vpop.trf.xlu0
  %v1232 = vpop.trf.xlu0
  %v1233 = vpop.trf.xlu0
  %v1234 = vpop.trf.xlu0
  %v1235 = vpop.trf.xlu0
  %v1236 = vpop.trf.xlu0
  %v1237 = vpop.trf.xlu0
  %v1238 = vpop.trf.xlu0
  %1239 = vxpose.xlu0.b32.start [1/16] %v955, 128
  %1240 = vxpose.xlu0.b32.cont [2/16] %v956, 128
  %1241 = vxpose.xlu0.b32.cont [3/16] %v957, 128
  %1242 = vxpose.xlu0.b32.cont [4/16] %v958, 128
  %1243 = vxpose.xlu0.b32.cont [5/16] %v959, 128
  %1244 = vxpose.xlu0.b32.cont [6/16] %v960, 128
  %1245 = vxpose.xlu0.b32.cont [7/16] %v961, 128
  %1246 = vxpose.xlu0.b32.cont [8/16] %v962, 128
  %1247 = vxpose.xlu0.b32.cont [9/16] %v963, 128
  %1248 = vxpose.xlu0.b32.cont [10/16] %v964, 128
  %1249 = vxpose.xlu0.b32.cont [11/16] %v965, 128
  %1250 = vxpose.xlu0.b32.cont [12/16] %v966, 128
  %1251 = vxpose.xlu0.b32.cont [13/16] %v967, 128
  %1252 = vxpose.xlu0.b32.cont [14/16] %v968, 128
  %1253 = vxpose.xlu0.b32.cont [15/16] %v969, 128
  %1254 = vxpose.xlu0.b32.end [16/16] %v970, 128
  %v1255 = vpop.trf.xlu0
  %v1256 = vpop.trf.xlu0
  %v1257 = vpop.trf.xlu0
  %v1258 = vpop.trf.xlu0
  %v1259 = vpop.trf.xlu0
  %v1260 = vpop.trf.xlu0
  %v1261 = vpop.trf.xlu0
  %v1262 = vpop.trf.xlu0
  %v1263 = vpop.trf.xlu0
  %v1264 = vpop.trf.xlu0
  %v1265 = vpop.trf.xlu0
  %v1266 = vpop.trf.xlu0
  %v1267 = vpop.trf.xlu0
  %v1268 = vpop.trf.xlu0
  %v1269 = vpop.trf.xlu0
  %v1270 = vpop.trf.xlu0
  %1271 = vxpose.xlu0.b32.start [1/16] %v971, 128
  %1272 = vxpose.xlu0.b32.cont [2/16] %v972, 128
  %1273 = vxpose.xlu0.b32.cont [3/16] %v973, 128
  %1274 = vxpose.xlu0.b32.cont [4/16] %v974, 128
  %1275 = vxpose.xlu0.b32.cont [5/16] %v975, 128
  %1276 = vxpose.xlu0.b32.cont [6/16] %v976, 128
  %1277 = vxpose.xlu0.b32.cont [7/16] %v977, 128
  %1278 = vxpose.xlu0.b32.cont [8/16] %v978, 128
  %1279 = vxpose.xlu0.b32.cont [9/16] %v979, 128
  %1280 = vxpose.xlu0.b32.cont [10/16] %v980, 128
  %1281 = vxpose.xlu0.b32.cont [11/16] %v981, 128
  %1282 = vxpose.xlu0.b32.cont [12/16] %v982, 128
  %1283 = vxpose.xlu0.b32.cont [13/16] %v983, 128
  %1284 = vxpose.xlu0.b32.cont [14/16] %v984, 128
  %1285 = vxpose.xlu0.b32.cont [15/16] %v985, 128
  %1286 = vxpose.xlu0.b32.end [16/16] %v986, 128
  %v1287 = vpop.trf.xlu0
  %v1288 = vpop.trf.xlu0
  %v1289 = vpop.trf.xlu0
  %v1290 = vpop.trf.xlu0
  %v1291 = vpop.trf.xlu0
  %v1292 = vpop.trf.xlu0
  %v1293 = vpop.trf.xlu0
  %v1294 = vpop.trf.xlu0
  %v1295 = vpop.trf.xlu0
  %v1296 = vpop.trf.xlu0
  %v1297 = vpop.trf.xlu0
  %v1298 = vpop.trf.xlu0
  %v1299 = vpop.trf.xlu0
  %v1300 = vpop.trf.xlu0
  %v1301 = vpop.trf.xlu0
  %v1302 = vpop.trf.xlu0
  %1303 = vxpose.xlu0.b32.start [1/16] %v987, 128
  %1304 = vxpose.xlu0.b32.cont [2/16] %v988, 128
  %1305 = vxpose.xlu0.b32.cont [3/16] %v989, 128
  %1306 = vxpose.xlu0.b32.cont [4/16] %v990, 128
  %1307 = vxpose.xlu0.b32.cont [5/16] %v991, 128
  %1308 = vxpose.xlu0.b32.cont [6/16] %v992, 128
  %1309 = vxpose.xlu0.b32.cont [7/16] %v993, 128
  %1310 = vxpose.xlu0.b32.cont [8/16] %v994, 128
  %1311 = vxpose.xlu0.b32.cont [9/16] %v995, 128
  %1312 = vxpose.xlu0.b32.cont [10/16] %v996, 128
  %1313 = vxpose.xlu0.b32.cont [11/16] %v997, 128
  %1314 = vxpose.xlu0.b32.cont [12/16] %v998, 128
  %1315 = vxpose.xlu0.b32.cont [13/16] %v999, 128
  %1316 = vxpose.xlu0.b32.cont [14/16] %v1000, 128
  %1317 = vxpose.xlu0.b32.cont [15/16] %v1001, 128
  %1318 = vxpose.xlu0.b32.end [16/16] %v1002, 128
  %v1319 = vpop.trf.xlu0
  %v1320 = vpop.trf.xlu0
  %v1321 = vpop.trf.xlu0
  %v1322 = vpop.trf.xlu0
  %v1323 = vpop.trf.xlu0
  %v1324 = vpop.trf.xlu0
  %v1325 = vpop.trf.xlu0
  %v1326 = vpop.trf.xlu0
  %v1327 = vpop.trf.xlu0
  %v1328 = vpop.trf.xlu0
  %v1329 = vpop.trf.xlu0
  %v1330 = vpop.trf.xlu0
  %v1331 = vpop.trf.xlu0
  %v1332 = vpop.trf.xlu0
  %v1333 = vpop.trf.xlu0
  %v1334 = vpop.trf.xlu0
  %1335 = vxpose.xlu0.b32.start [1/16] %v1003, 128
  %1336 = vxpose.xlu0.b32.cont [2/16] %v1004, 128
  %1337 = vxpose.xlu0.b32.cont [3/16] %v1005, 128
  %1338 = vxpose.xlu0.b32.cont [4/16] %v1006, 128
  %1339 = vxpose.xlu0.b32.cont [5/16] %v1007, 128
  %1340 = vxpose.xlu0.b32.cont [6/16] %v1008, 128
  %1341 = vxpose.xlu0.b32.cont [7/16] %v1009, 128
  %1342 = vxpose.xlu0.b32.cont [8/16] %v1010, 128
  %1343 = vxpose.xlu0.b32.cont [9/16] %v1011, 128
  %1344 = vxpose.xlu0.b32.cont [10/16] %v1012, 128
  %1345 = vxpose.xlu0.b32.cont [11/16] %v1013, 128
  %1346 = vxpose.xlu0.b32.cont [12/16] %v1014, 128
  %1347 = vxpose.xlu0.b32.cont [13/16] %v1015, 128
  %1348 = vxpose.xlu0.b32.cont [14/16] %v1016, 128
  %1349 = vxpose.xlu0.b32.cont [15/16] %v1017, 128
  %1350 = vxpose.xlu0.b32.end [16/16] %v1018, 128
  %v1351 = vpop.trf.xlu0
  %v1352 = vpop.trf.xlu0
  %v1353 = vpop.trf.xlu0
  %v1354 = vpop.trf.xlu0
  %v1355 = vpop.trf.xlu0
  %v1356 = vpop.trf.xlu0
  %v1357 = vpop.trf.xlu0
  %v1358 = vpop.trf.xlu0
  %v1359 = vpop.trf.xlu0
  %v1360 = vpop.trf.xlu0
  %v1361 = vpop.trf.xlu0
  %v1362 = vpop.trf.xlu0
  %v1363 = vpop.trf.xlu0
  %v1364 = vpop.trf.xlu0
  %v1365 = vpop.trf.xlu0
  %v1366 = vpop.trf.xlu0
  %1367 = vxpose.xlu0.b32.start [1/16] %v1019, 128
  %1368 = vxpose.xlu0.b32.cont [2/16] %v1020, 128
  %1369 = vxpose.xlu0.b32.cont [3/16] %v1021, 128
  %1370 = vxpose.xlu0.b32.cont [4/16] %v1022, 128
  %1371 = vxpose.xlu0.b32.cont [5/16] %v1023, 128
  %1372 = vxpose.xlu0.b32.cont [6/16] %v1024, 128
  %1373 = vxpose.xlu0.b32.cont [7/16] %v1025, 128
  %1374 = vxpose.xlu0.b32.cont [8/16] %v1026, 128
  %1375 = vxpose.xlu0.b32.cont [9/16] %v1027, 128
  %1376 = vxpose.xlu0.b32.cont [10/16] %v1028, 128
  %1377 = vxpose.xlu0.b32.cont [11/16] %v1029, 128
  %1378 = vxpose.xlu0.b32.cont [12/16] %v1030, 128
  %1379 = vxpose.xlu0.b32.cont [13/16] %v1031, 128
  %1380 = vxpose.xlu0.b32.cont [14/16] %v1032, 128
  %1381 = vxpose.xlu0.b32.cont [15/16] %v1033, 128
  %1382 = vxpose.xlu0.b32.end [16/16] %v1034, 128
  %v1383 = vpop.trf.xlu0
  %v1384 = vpop.trf.xlu0
  %v1385 = vpop.trf.xlu0
  %v1386 = vpop.trf.xlu0
  %v1387 = vpop.trf.xlu0
  %v1388 = vpop.trf.xlu0
  %v1389 = vpop.trf.xlu0
  %v1390 = vpop.trf.xlu0
  %v1391 = vpop.trf.xlu0
  %v1392 = vpop.trf.xlu0
  %v1393 = vpop.trf.xlu0
  %v1394 = vpop.trf.xlu0
  %v1395 = vpop.trf.xlu0
  %v1396 = vpop.trf.xlu0
  %v1397 = vpop.trf.xlu0
  %v1398 = vpop.trf.xlu0
  %1399 = vxpose.xlu0.b32.start [1/16] %v1035, 128
  %1400 = vxpose.xlu0.b32.cont [2/16] %v1036, 128
  %1401 = vxpose.xlu0.b32.cont [3/16] %v1037, 128
  %1402 = vxpose.xlu0.b32.cont [4/16] %v1038, 128
  %1403 = vxpose.xlu0.b32.cont [5/16] %v1039, 128
  %1404 = vxpose.xlu0.b32.cont [6/16] %v1040, 128
  %1405 = vxpose.xlu0.b32.cont [7/16] %v1041, 128
  %1406 = vxpose.xlu0.b32.cont [8/16] %v1042, 128
  %1407 = vxpose.xlu0.b32.cont [9/16] %v1043, 128
  %1408 = vxpose.xlu0.b32.cont [10/16] %v1044, 128
  %1409 = vxpose.xlu0.b32.cont [11/16] %v1045, 128
  %1410 = vxpose.xlu0.b32.cont [12/16] %v1046, 128
  %1411 = vxpose.xlu0.b32.cont [13/16] %v1047, 128
  %1412 = vxpose.xlu0.b32.cont [14/16] %v1048, 128
  %1413 = vxpose.xlu0.b32.cont [15/16] %v1049, 128
  %1414 = vxpose.xlu0.b32.end [16/16] %v1050, 128
  %v1415 = vpop.trf.xlu0
  %v1416 = vpop.trf.xlu0
  %v1417 = vpop.trf.xlu0
  %v1418 = vpop.trf.xlu0
  %v1419 = vpop.trf.xlu0
  %v1420 = vpop.trf.xlu0
  %v1421 = vpop.trf.xlu0
  %v1422 = vpop.trf.xlu0
  %v1423 = vpop.trf.xlu0
  %v1424 = vpop.trf.xlu0
  %v1425 = vpop.trf.xlu0
  %v1426 = vpop.trf.xlu0
  %v1427 = vpop.trf.xlu0
  %v1428 = vpop.trf.xlu0
  %v1429 = vpop.trf.xlu0
  %v1430 = vpop.trf.xlu0
  %1431 = vxpose.xlu0.b32.start [1/16] %v1051, 128
  %1432 = vxpose.xlu0.b32.cont [2/16] %v1052, 128
  %1433 = vxpose.xlu0.b32.cont [3/16] %v1053, 128
  %1434 = vxpose.xlu0.b32.cont [4/16] %v1054, 128
  %1435 = vxpose.xlu0.b32.cont [5/16] %v1055, 128
  %1436 = vxpose.xlu0.b32.cont [6/16] %v1056, 128
  %1437 = vxpose.xlu0.b32.cont [7/16] %v1057, 128
  %1438 = vxpose.xlu0.b32.cont [8/16] %v1058, 128
  %1439 = vxpose.xlu0.b32.cont [9/16] %v1059, 128
  %1440 = vxpose.xlu0.b32.cont [10/16] %v1060, 128
  %1441 = vxpose.xlu0.b32.cont [11/16] %v1061, 128
  %1442 = vxpose.xlu0.b32.cont [12/16] %v1062, 128
  %1443 = vxpose.xlu0.b32.cont [13/16] %v1063, 128
  %1444 = vxpose.xlu0.b32.cont [14/16] %v1064, 128
  %1445 = vxpose.xlu0.b32.cont [15/16] %v1065, 128
  %1446 = vxpose.xlu0.b32.end [16/16] %v1066, 128
  %v1447 = vpop.trf.xlu0
  %v1448 = vpop.trf.xlu0
  %v1449 = vpop.trf.xlu0
  %v1450 = vpop.trf.xlu0
  %v1451 = vpop.trf.xlu0
  %v1452 = vpop.trf.xlu0
  %v1453 = vpop.trf.xlu0
  %v1454 = vpop.trf.xlu0
  %v1455 = vpop.trf.xlu0
  %v1456 = vpop.trf.xlu0
  %v1457 = vpop.trf.xlu0
  %v1458 = vpop.trf.xlu0
  %v1459 = vpop.trf.xlu0
  %v1460 = vpop.trf.xlu0
  %v1461 = vpop.trf.xlu0
  %v1462 = vpop.trf.xlu0
  %1463 = vxpose.xlu0.b32.start [1/16] %v1067, 128
  %1464 = vxpose.xlu0.b32.cont [2/16] %v1068, 128
  %1465 = vxpose.xlu0.b32.cont [3/16] %v1069, 128
  %1466 = vxpose.xlu0.b32.cont [4/16] %v1070, 128
  %1467 = vxpose.xlu0.b32.cont [5/16] %v1071, 128
  %1468 = vxpose.xlu0.b32.cont [6/16] %v1072, 128
  %1469 = vxpose.xlu0.b32.cont [7/16] %v1073, 128
  %1470 = vxpose.xlu0.b32.cont [8/16] %v1074, 128
  %1471 = vxpose.xlu0.b32.cont [9/16] %v1075, 128
  %1472 = vxpose.xlu0.b32.cont [10/16] %v1076, 128
  %1473 = vxpose.xlu0.b32.cont [11/16] %v1077, 128
  %1474 = vxpose.xlu0.b32.cont [12/16] %v1078, 128
  %1475 = vxpose.xlu0.b32.cont [13/16] %v1079, 128
  %1476 = vxpose.xlu0.b32.cont [14/16] %v1080, 128
  %1477 = vxpose.xlu0.b32.cont [15/16] %v1081, 128
  %1478 = vxpose.xlu0.b32.end [16/16] %v1082, 128
  %v1479 = vpop.trf.xlu0
  %v1480 = vpop.trf.xlu0
  %v1481 = vpop.trf.xlu0
  %v1482 = vpop.trf.xlu0
  %v1483 = vpop.trf.xlu0
  %v1484 = vpop.trf.xlu0
  %v1485 = vpop.trf.xlu0
  %v1486 = vpop.trf.xlu0
  %v1487 = vpop.trf.xlu0
  %v1488 = vpop.trf.xlu0
  %v1489 = vpop.trf.xlu0
  %v1490 = vpop.trf.xlu0
  %v1491 = vpop.trf.xlu0
  %v1492 = vpop.trf.xlu0
  %v1493 = vpop.trf.xlu0
  %v1494 = vpop.trf.xlu0
  %1495 = vxpose.xlu0.b32.start [1/16] %v1083, 128
  %1496 = vxpose.xlu0.b32.cont [2/16] %v1084, 128
  %1497 = vxpose.xlu0.b32.cont [3/16] %v1085, 128
  %1498 = vxpose.xlu0.b32.cont [4/16] %v1086, 128
  %1499 = vxpose.xlu0.b32.cont [5/16] %v1087, 128
  %1500 = vxpose.xlu0.b32.cont [6/16] %v1088, 128
  %1501 = vxpose.xlu0.b32.cont [7/16] %v1089, 128
  %1502 = vxpose.xlu0.b32.cont [8/16] %v1090, 128
  %1503 = vxpose.xlu0.b32.cont [9/16] %v1091, 128
  %1504 = vxpose.xlu0.b32.cont [10/16] %v1092, 128
  %1505 = vxpose.xlu0.b32.cont [11/16] %v1093, 128
  %1506 = vxpose.xlu0.b32.cont [12/16] %v1094, 128
  %1507 = vxpose.xlu0.b32.cont [13/16] %v1095, 128
  %1508 = vxpose.xlu0.b32.cont [14/16] %v1096, 128
  %1509 = vxpose.xlu0.b32.cont [15/16] %v1097, 128
  %1510 = vxpose.xlu0.b32.end [16/16] %v1098, 128
  %v1511 = vpop.trf.xlu0
  %v1512 = vpop.trf.xlu0
  %v1513 = vpop.trf.xlu0
  %v1514 = vpop.trf.xlu0
  %v1515 = vpop.trf.xlu0
  %v1516 = vpop.trf.xlu0
  %v1517 = vpop.trf.xlu0
  %v1518 = vpop.trf.xlu0
  %v1519 = vpop.trf.xlu0
  %v1520 = vpop.trf.xlu0
  %v1521 = vpop.trf.xlu0
  %v1522 = vpop.trf.xlu0
  %v1523 = vpop.trf.xlu0
  %v1524 = vpop.trf.xlu0
  %v1525 = vpop.trf.xlu0
  %v1526 = vpop.trf.xlu0
  %1527 = vxpose.xlu0.b32.start [1/16] %v1099, 128
  %1528 = vxpose.xlu0.b32.cont [2/16] %v1100, 128
  %1529 = vxpose.xlu0.b32.cont [3/16] %v1101, 128
  %1530 = vxpose.xlu0.b32.cont [4/16] %v1102, 128
  %1531 = vxpose.xlu0.b32.cont [5/16] %v1103, 128
  %1532 = vxpose.xlu0.b32.cont [6/16] %v1104, 128
  %1533 = vxpose.xlu0.b32.cont [7/16] %v1105, 128
  %1534 = vxpose.xlu0.b32.cont [8/16] %v1106, 128
  %1535 = vxpose.xlu0.b32.cont [9/16] %v1107, 128
  %1536 = vxpose.xlu0.b32.cont [10/16] %v1108, 128
  %1537 = vxpose.xlu0.b32.cont [11/16] %v1109, 128
  %1538 = vxpose.xlu0.b32.cont [12/16] %v1110, 128
  %1539 = vxpose.xlu0.b32.cont [13/16] 0.0, 128
  %1540 = vxpose.xlu0.b32.cont [14/16] 0.0, 128
  %1541 = vxpose.xlu0.b32.cont [15/16] 0.0, 128
  %1542 = vxpose.xlu0.b32.end [16/16] 0.0, 128
  %v1543 = vpop.trf.xlu0
  %v1544 = vpop.trf.xlu0
  %v1545 = vpop.trf.xlu0
  %v1546 = vpop.trf.xlu0
  %v1547 = vpop.trf.xlu0
  %v1548 = vpop.trf.xlu0
  %v1549 = vpop.trf.xlu0
  %v1550 = vpop.trf.xlu0
  %v1551 = vpop.trf.xlu0
  %v1552 = vpop.trf.xlu0
  %v1553 = vpop.trf.xlu0
  %v1554 = vpop.trf.xlu0
  %v1555 = vpop.trf.xlu0
  %v1556 = vpop.trf.xlu0
  %v1557 = vpop.trf.xlu0
  %v1558 = vpop.trf.xlu0
  %vm1559 = vcmask 785408
  %v1561 = vsel %vm1559, %v1543, 0
  %v1564 = vsel %vm1559, %v1544, 0
  %v1567 = vsel %vm1559, %v1545, 0
  %v1570 = vsel %vm1559, %v1546, 0
  %v1573 = vsel %vm1559, %v1547, 0
  %v1576 = vsel %vm1559, %v1548, 0
  %v1579 = vsel %vm1559, %v1549, 0
  %v1582 = vsel %vm1559, %v1550, 0
  %v1585 = vsel %vm1559, %v1551, 0
  %v1588 = vsel %vm1559, %v1552, 0
  %v1591 = vsel %vm1559, %v1553, 0
  %v1594 = vsel %vm1559, %v1554, 0
  %v1597 = vsel %vm1559, %v1555, 0
  %v1600 = vsel %vm1559, %v1556, 0
  %v1603 = vsel %vm1559, %v1557, 0
  %v1606 = vsel %vm1559, %v1558, 0
  %1608 = vmatprep.subr.mxu0 %v452
  %1609 = vmatpush1.msra.mxu0 %v451
  %1610 = vmatprep.subr.mxu0 %v454
  %1611 = vmatpush1.msra.mxu0 %v453
  %1612 = vmatprep.subr.mxu0 %v456
  %1613 = vmatpush1.msra.mxu0 %v455
  %1614 = vmatprep.subr.mxu0 %v458
  %1615 = vmatpush1.msra.mxu0 %v457
  %1616 = vmatprep.subr.mxu0 %v460
  %1617 = vmatpush1.msra.mxu0 %v459
  %1618 = vmatprep.subr.mxu0 %v462
  %1619 = vmatpush1.msra.mxu0 %v461
  %1620 = vmatprep.subr.mxu0 %v464
  %1621 = vmatpush1.msra.mxu0 %v463
  %1622 = vmatprep.subr.mxu0 %v466
  %1623 = vmatpush1.msra.mxu0 %v465
  %1624 = vmatprep.subr.mxu0 %v468
  %1625 = vmatpush1.msra.mxu0 %v467
  %1626 = vmatprep.subr.mxu0 %v470
  %1627 = vmatpush1.msra.mxu0 %v469
  %1628 = vmatprep.subr.mxu0 %v472
  %1629 = vmatpush1.msra.mxu0 %v471
  %1630 = vmatprep.subr.mxu0 %v474
  %1631 = vmatpush1.msra.mxu0 %v473
  %1632 = vmatprep.subr.mxu0 %v476
  %1633 = vmatpush1.msra.mxu0 %v475
  %1634 = vmatprep.subr.mxu0 %v478
  %1635 = vmatpush1.msra.mxu0 %v477
  %1636 = vmatprep.subr.mxu0 %v480
  %1637 = vmatpush1.msra.mxu0 %v479
  %1638 = vmatprep.subr.mxu0 %v482
  %1639 = vmatpush1.msra.mxu0 %v481
  %1640 = vmatprep.subr.mxu0 %v484
  %1641 = vmatpush1.msra.mxu0 %v483
  %1642 = vmatprep.subr.mxu0 %v486
  %1643 = vmatpush1.msra.mxu0 %v485
  %1644 = vmatprep.subr.mxu0 %v488
  %1645 = vmatpush1.msra.mxu0 %v487
  %1646 = vmatprep.subr.mxu0 %v490
  %1647 = vmatpush1.msra.mxu0 %v489
  %1648 = vmatprep.subr.mxu0 %v492
  %1649 = vmatpush1.msra.mxu0 %v491
  %1650 = vmatprep.subr.mxu0 %v494
  %1651 = vmatpush1.msra.mxu0 %v493
  %1652 = vmatprep.subr.mxu0 %v496
  %1653 = vmatpush1.msra.mxu0 %v495
  %1654 = vmatprep.subr.mxu0 %v498
  %1655 = vmatpush1.msra.mxu0 %v497
  %1656 = vmatprep.subr.mxu0 %v500
  %1657 = vmatpush1.msra.mxu0 %v499
  %1658 = vmatprep.subr.mxu0 %v502
  %1659 = vmatpush1.msra.mxu0 %v501
  %1660 = vmatprep.subr.mxu0 %v504
  %1661 = vmatpush1.msra.mxu0 %v503
  %1662 = vmatprep.subr.mxu0 %v506
  %1663 = vmatpush1.msra.mxu0 %v505
  %1664 = vmatprep.subr.mxu0 %v508
  %1665 = vmatpush1.msra.mxu0 %v507
  %1666 = vmatprep.subr.mxu0 %v510
  %1667 = vmatpush1.msra.mxu0 %v509
  %1668 = vmatprep.subr.mxu0 %v512
  %1669 = vmatpush1.msra.mxu0 %v511
  %1670 = vmatprep.subr.mxu0 %v514
  %1671 = vmatpush1.msra.mxu0 %v513
  %1672 = vmatprep.mubr.f32.mxu0 %v1159
  %1673 = vmatmul.mubr.f32.gmra.mrb[0].mxu0 %v1127
  %v1674 = vpop.f32.mrb[0].mxu0
  %v1675 = vadd.f32 0.0, %v1674
  %v1676 = vpop.f32.mrb[0].mxu0
  %v1677 = vadd.f32 0.0, %v1676
  %1678 = vmatprep.mubr.f32.mxu0 %v1160
  %1679 = vmatmul.mubr.f32.gmra.mrb[0].mxu0 %v1128
  %v1680 = vpop.f32.mrb[0].mxu0
  %v1681 = vadd.f32 0.0, %v1680
  %v1682 = vpop.f32.mrb[0].mxu0
  %v1683 = vadd.f32 0.0, %v1682
  %1684 = vmatprep.mubr.f32.mxu0 %v1161
  %1685 = vmatmul.mubr.f32.gmra.mrb[0].mxu0 %v1129
  %v1686 = vpop.f32.mrb[0].mxu0
  %v1687 = vadd.f32 0.0, %v1686
  %v1688 = vpop.f32.mrb[0].mxu0
  %v1689 = vadd.f32 0.0, %v1688
  %1690 = vmatprep.mubr.f32.mxu0 %v1162
  %1691 = vmatmul.mubr.f32.gmra.mrb[0].mxu0 %v1130
  %v1692 = vpop.f32.mrb[0].mxu0
  %v1693 = vadd.f32 0.0, %v1692
  %v1694 = vpop.f32.mrb[0].mxu0
  %v1695 = vadd.f32 0.0, %v1694
  %1696 = vmatprep.mubr.f32.mxu0 %v1163
  %1697 = vmatmul.mubr.f32.gmra.mrb[0].mxu0 %v1131
  %v1698 = vpop.f32.mrb[0].mxu0
  %v1699 = vadd.f32 0.0, %v1698
  %v1700 = vpop.f32.mrb[0].mxu0
  %v1701 = vadd.f32 0.0, %v1700
  %1702 = vmatprep.mubr.f32.mxu0 %v1164
  %1703 = vmatmul.mubr.f32.gmra.mrb[0].mxu0 %v1132
  %v1704 = vpop.f32.mrb[0].mxu0
  %v1705 = vadd.f32 0.0, %v1704
  %v1706 = vpop.f32.mrb[0].mxu0
  %v1707 = vadd.f32 0.0, %v1706
  %1708 = vmatprep.mubr.f32.mxu0 %v1165
  %1709 = vmatmul.mubr.f32.gmra.mrb[0].mxu0 %v1133
  %v1710 = vpop.f32.mrb[0].mxu0
  %v1711 = vadd.f32 0.0, %v1710
  %v1712 = vpop.f32.mrb[0].mxu0
  %v1713 = vadd.f32 0.0, %v1712
  %1714 = vmatprep.mubr.f32.mxu0 %v1166
  %1715 = vmatmul.mubr.f32.gmra.mrb[0].mxu0 %v1134
  %v1716 = vpop.f32.mrb[0].mxu0
  %v1717 = vadd.f32 0.0, %v1716
  %v1718 = vpop.f32.mrb[0].mxu0
  %v1719 = vadd.f32 0.0, %v1718
  %1720 = vmatprep.mubr.f32.mxu0 %v1167
  %1721 = vmatmul.mubr.f32.gmra.mrb[0].mxu0 %v1135
  %v1722 = vpop.f32.mrb[0].mxu0
  %v1723 = vadd.f32 0.0, %v1722
  %v1724 = vpop.f32.mrb[0].mxu0
  %v1725 = vadd.f32 0.0, %v1724
  %1726 = vmatprep.mubr.f32.mxu0 %v1168
  %1727 = vmatmul.mubr.f32.gmra.mrb[0].mxu0 %v1136
  %v1728 = vpop.f32.mrb[0].mxu0
  %v1729 = vadd.f32 0.0, %v1728
  %v1730 = vpop.f32.mrb[0].mxu0
  %v1731 = vadd.f32 0.0, %v1730
  %1732 = vmatprep.mubr.f32.mxu0 %v1169
  %1733 = vmatmul.mubr.f32.gmra.mrb[0].mxu0 %v1137
  %v1734 = vpop.f32.mrb[0].mxu0
  %v1735 = vadd.f32 0.0, %v1734
  %v1736 = vpop.f32.mrb[0].mxu0
  %v1737 = vadd.f32 0.0, %v1736
  %1738 = vmatprep.mubr.f32.mxu0 %v1170
  %1739 = vmatmul.mubr.f32.gmra.mrb[0].mxu0 %v1138
  %v1740 = vpop.f32.mrb[0].mxu0
  %v1741 = vadd.f32 0.0, %v1740
  %v1742 = vpop.f32.mrb[0].mxu0
  %v1743 = vadd.f32 0.0, %v1742
  %1744 = vmatprep.mubr.f32.mxu0 %v1171
  %1745 = vmatmul.mubr.f32.gmra.mrb[0].mxu0 %v1139
  %v1746 = vpop.f32.mrb[0].mxu0
  %v1747 = vadd.f32 0.0, %v1746
  %v1748 = vpop.f32.mrb[0].mxu0
  %v1749 = vadd.f32 0.0, %v1748
  %1750 = vmatprep.mubr.f32.mxu0 %v1172
  %1751 = vmatmul.mubr.f32.gmra.mrb[0].mxu0 %v1140
  %v1752 = vpop.f32.mrb[0].mxu0
  %v1753 = vadd.f32 0.0, %v1752
  %v1754 = vpop.f32.mrb[0].mxu0
  %v1755 = vadd.f32 0.0, %v1754
  %1756 = vmatprep.mubr.f32.mxu0 %v1173
  %1757 = vmatmul.mubr.f32.gmra.mrb[0].mxu0 %v1141
  %v1758 = vpop.f32.mrb[0].mxu0
  %v1759 = vadd.f32 0.0, %v1758
  %v1760 = vpop.f32.mrb[0].mxu0
  %v1761 = vadd.f32 0.0, %v1760
  %1762 = vmatprep.mubr.f32.mxu0 %v1174
  %1763 = vmatmul.mubr.f32.gmra.mrb[0].mxu0 %v1142
  %v1764 = vpop.f32.mrb[0].mxu0
  %v1765 = vadd.f32 0.0, %v1764
  %v1766 = vpop.f32.mrb[0].mxu0
  %v1767 = vadd.f32 0.0, %v1766
  %1768 = vdwg.mxu0
  %1769 = vmatprep.subr.mxu0 %v516
  %1770 = vmatpush1.msra.mxu0 %v515
  %1771 = vmatprep.subr.mxu0 %v518
  %1772 = vmatpush1.msra.mxu0 %v517
  %1773 = vmatprep.subr.mxu0 %v520
  %1774 = vmatpush1.msra.mxu0 %v519
  %1775 = vmatprep.subr.mxu0 %v522
  %1776 = vmatpush1.msra.mxu0 %v521
  %1777 = vmatprep.subr.mxu0 %v524
  %1778 = vmatpush1.msra.mxu0 %v523
  %1779 = vmatprep.subr.mxu0 %v526
  %1780 = vmatpush1.msra.mxu0 %v525
  %1781 = vmatprep.subr.mxu0 %v528
  %1782 = vmatpush1.msra.mxu0 %v527
  %1783 = vmatprep.subr.mxu0 %v530
  %1784 = vmatpush1.msra.mxu0 %v529
  %1785 = vmatprep.subr.mxu0 %v532
  %1786 = vmatpush1.msra.mxu0 %v531
  %1787 = vmatprep.subr.mxu0 %v534
  %1788 = vmatpush1.msra.mxu0 %v533
  %1789 = vmatprep.subr.mxu0 %v536
  %1790 = vmatpush1.msra.mxu0 %v535
  %1791 = vmatprep.subr.mxu0 %v538
  %1792 = vmatpush1.msra.mxu0 %v537
  %1793 = vmatprep.subr.mxu0 %v540
  %1794 = vmatpush1.msra.mxu0 %v539
  %1795 = vmatprep.subr.mxu0 %v542
  %1796 = vmatpush1.msra.mxu0 %v541
  %1797 = vmatprep.subr.mxu0 %v544
  %1798 = vmatpush1.msra.mxu0 %v543
  %1799 = vmatprep.subr.mxu0 %v546
  %1800 = vmatpush1.msra.mxu0 %v545
  %1801 = vmatprep.subr.mxu0 %v548
  %1802 = vmatpush1.msra.mxu0 %v547
  %1803 = vmatprep.subr.mxu0 %v550
  %1804 = vmatpush1.msra.mxu0 %v549
  %1805 = vmatprep.subr.mxu0 %v552
  %1806 = vmatpush1.msra.mxu0 %v551
  %1807 = vmatprep.subr.mxu0 %v554
  %1808 = vmatpush1.msra.mxu0 %v553
  %1809 = vmatprep.subr.mxu0 %v556
  %1810 = vmatpush1.msra.mxu0 %v555
  %1811 = vmatprep.subr.mxu0 %v558
  %1812 = vmatpush1.msra.mxu0 %v557
  %1813 = vmatprep.subr.mxu0 %v560
  %1814 = vmatpush1.msra.mxu0 %v559
  %1815 = vmatprep.subr.mxu0 %v562
  %1816 = vmatpush1.msra.mxu0 %v561
  %1817 = vmatprep.subr.mxu0 %v564
  %1818 = vmatpush1.msra.mxu0 %v563
  %1819 = vmatprep.subr.mxu0 %v566
  %1820 = vmatpush1.msra.mxu0 %v565
  %1821 = vmatprep.subr.mxu0 %v568
  %1822 = vmatpush1.msra.mxu0 %v567
  %1823 = vmatprep.subr.mxu0 %v570
  %1824 = vmatpush1.msra.mxu0 %v569
  %1825 = vmatprep.subr.mxu0 %v572
  %1826 = vmatpush1.msra.mxu0 %v571
  %1827 = vmatprep.subr.mxu0 %v574
  %1828 = vmatpush1.msra.mxu0 %v573
  %1829 = vmatprep.subr.mxu0 %v576
  %1830 = vmatpush1.msra.mxu0 %v575
  %1831 = vmatprep.subr.mxu0 %v578
  %1832 = vmatpush1.msra.mxu0 %v577
  %1833 = vmatprep.mubr.f32.mxu0 %v1223
  %1834 = vmatmul.mubr.f32.gmra.mrb[0].mxu0 %v1191
  %v1835 = vpop.f32.mrb[0].mxu0
  %v1836 = vadd.f32 %v1675, %v1835
  %v1837 = vpop.f32.mrb[0].mxu0
  %v1838 = vadd.f32 %v1677, %v1837
  %1839 = vmatprep.mubr.f32.mxu0 %v1224
  %1840 = vmatmul.mubr.f32.gmra.mrb[0].mxu0 %v1192
  %v1841 = vpop.f32.mrb[0].mxu0
  %v1842 = vadd.f32 %v1681, %v1841
  %v1843 = vpop.f32.mrb[0].mxu0
  %v1844 = vadd.f32 %v1683, %v1843
  %1845 = vmatprep.mubr.f32.mxu0 %v1225
  %1846 = vmatmul.mubr.f32.gmra.mrb[0].mxu0 %v1193
  %v1847 = vpop.f32.mrb[0].mxu0
  %v1848 = vadd.f32 %v1687, %v1847
  %v1849 = vpop.f32.mrb[0].mxu0
  %v1850 = vadd.f32 %v1689, %v1849
  %1851 = vmatprep.mubr.f32.mxu0 %v1226
  %1852 = vmatmul.mubr.f32.gmra.mrb[0].mxu0 %v1194
  %v1853 = vpop.f32.mrb[0].mxu0
  %v1854 = vadd.f32 %v1693, %v1853
  %v1855 = vpop.f32.mrb[0].mxu0
  %v1856 = vadd.f32 %v1695, %v1855
  %1857 = vmatprep.mubr.f32.mxu0 %v1227
  %1858 = vmatmul.mubr.f32.gmra.mrb[0].mxu0 %v1195
  %v1859 = vpop.f32.mrb[0].mxu0
  %v1860 = vadd.f32 %v1699, %v1859
  %v1861 = vpop.f32.mrb[0].mxu0
  %v1862 = vadd.f32 %v1701, %v1861
  %1863 = vmatprep.mubr.f32.mxu0 %v1228
  %1864 = vmatmul.mubr.f32.gmra.mrb[0].mxu0 %v1196
  %v1865 = vpop.f32.mrb[0].mxu0
  %v1866 = vadd.f32 %v1705, %v1865
  %v1867 = vpop.f32.mrb[0].mxu0
  %v1868 = vadd.f32 %v1707, %v1867
  %1869 = vmatprep.mubr.f32.mxu0 %v1229
  %1870 = vmatmul.mubr.f32.gmra.mrb[0].mxu0 %v1197
  %v1871 = vpop.f32.mrb[0].mxu0
  %v1872 = vadd.f32 %v1711, %v1871
  %v1873 = vpop.f32.mrb[0].mxu0
  %v1874 = vadd.f32 %v1713, %v1873
  %1875 = vmatprep.mubr.f32.mxu0 %v1230
  %1876 = vmatmul.mubr.f32.gmra.mrb[0].mxu0 %v1198
  %v1877 = vpop.f32.mrb[0].mxu0
  %v1878 = vadd.f32 %v1717, %v1877
  %v1879 = vpop.f32.mrb[0].mxu0
  %v1880 = vadd.f32 %v1719, %v1879
  %1881 = vmatprep.mubr.f32.mxu0 %v1231
  %1882 = vmatmul.mubr.f32.gmra.mrb[0].mxu0 %v1199
  %v1883 = vpop.f32.mrb[0].mxu0
  %v1884 = vadd.f32 %v1723, %v1883
  %v1885 = vpop.f32.mrb[0].mxu0
  %v1886 = vadd.f32 %v1725, %v1885
  %1887 = vmatprep.mubr.f32.mxu0 %v1232
  %1888 = vmatmul.mubr.f32.gmra.mrb[0].mxu0 %v1200
  %v1889 = vpop.f32.mrb[0].mxu0
  %v1890 = vadd.f32 %v1729, %v1889
  %v1891 = vpop.f32.mrb[0].mxu0
  %v1892 = vadd.f32 %v1731, %v1891
  %1893 = vmatprep.mubr.f32.mxu0 %v1233
  %1894 = vmatmul.mubr.f32.gmra.mrb[0].mxu0 %v1201
  %v1895 = vpop.f32.mrb[0].mxu0
  %v1896 = vadd.f32 %v1735, %v1895
  %v1897 = vpop.f32.mrb[0].mxu0
  %v1898 = vadd.f32 %v1737, %v1897
  %1899 = vmatprep.mubr.f32.mxu0 %v1234
  %1900 = vmatmul.mubr.f32.gmra.mrb[0].mxu0 %v1202
  %v1901 = vpop.f32.mrb[0].mxu0
  %v1902 = vadd.f32 %v1741, %v1901
  %v1903 = vpop.f32.mrb[0].mxu0
  %v1904 = vadd.f32 %v1743, %v1903
  %1905 = vmatprep.mubr.f32.mxu0 %v1235
  %1906 = vmatmul.mubr.f32.gmra.mrb[0].mxu0 %v1203
  %v1907 = vpop.f32.mrb[0].mxu0
  %v1908 = vadd.f32 %v1747, %v1907
  %v1909 = vpop.f32.mrb[0].mxu0
  %v1910 = vadd.f32 %v1749, %v1909
  %1911 = vmatprep.mubr.f32.mxu0 %v1236
  %1912 = vmatmul.mubr.f32.gmra.mrb[0].mxu0 %v1204
  %v1913 = vpop.f32.mrb[0].mxu0
  %v1914 = vadd.f32 %v1753, %v1913
  %v1915 = vpop.f32.mrb[0].mxu0
  %v1916 = vadd.f32 %v1755, %v1915
  %1917 = vmatprep.mubr.f32.mxu0 %v1237
  %1918 = vmatmul.mubr.f32.gmra.mrb[0].mxu0 %v1205
  %v1919 = vpop.f32.mrb[0].mxu0
  %v1920 = vadd.f32 %v1759, %v1919
  %v1921 = vpop.f32.mrb[0].mxu0
  %v1922 = vadd.f32 %v1761, %v1921
  %1923 = vmatprep.mubr.f32.mxu0 %v1238
  %1924 = vmatmul.mubr.f32.gmra.mrb[0].mxu0 %v1206
  %v1925 = vpop.f32.mrb[0].mxu0
  %v1926 = vadd.f32 %v1765, %v1925
  %v1927 = vpop.f32.mrb[0].mxu0
  %v1928 = vadd.f32 %v1767, %v1927
  %1929 = vdwg.mxu0
  %1930 = vmatprep.subr.mxu0 %v580
  %1931 = vmatpush1.msra.mxu0 %v579
  %1932 = vmatprep.subr.mxu0 %v582
  %1933 = vmatpush1.msra.mxu0 %v581
  %1934 = vmatprep.subr.mxu0 %v584
  %1935 = vmatpush1.msra.mxu0 %v583
  %1936 = vmatprep.subr.mxu0 %v586
  %1937 = vmatpush1.msra.mxu0 %v585
  %1938 = vmatprep.subr.mxu0 %v588
  %1939 = vmatpush1.msra.mxu0 %v587
  %1940 = vmatprep.subr.mxu0 %v590
  %1941 = vmatpush1.msra.mxu0 %v589
  %1942 = vmatprep.subr.mxu0 %v592
  %1943 = vmatpush1.msra.mxu0 %v591
  %1944 = vmatprep.subr.mxu0 %v594
  %1945 = vmatpush1.msra.mxu0 %v593
  %1946 = vmatprep.subr.mxu0 %v596
  %1947 = vmatpush1.msra.mxu0 %v595
  %1948 = vmatprep.subr.mxu0 %v598
  %1949 = vmatpush1.msra.mxu0 %v597
  %1950 = vmatprep.subr.mxu0 %v600
  %1951 = vmatpush1.msra.mxu0 %v599
  %1952 = vmatprep.subr.mxu0 %v602
  %1953 = vmatpush1.msra.mxu0 %v601
  %1954 = vmatprep.subr.mxu0 %v604
  %1955 = vmatpush1.msra.mxu0 %v603
  %1956 = vmatprep.subr.mxu0 %v606
  %1957 = vmatpush1.msra.mxu0 %v605
  %1958 = vmatprep.subr.mxu0 %v608
  %1959 = vmatpush1.msra.mxu0 %v607
  %1960 = vmatprep.subr.mxu0 %v610
  %1961 = vmatpush1.msra.mxu0 %v609
  %1962 = vmatprep.subr.mxu0 %v612
  %1963 = vmatpush1.msra.mxu0 %v611
  %1964 = vmatprep.subr.mxu0 %v614
  %1965 = vmatpush1.msra.mxu0 %v613
  %1966 = vmatprep.subr.mxu0 %v616
  %1967 = vmatpush1.msra.mxu0 %v615
  %1968 = vmatprep.subr.mxu0 %v618
  %1969 = vmatpush1.msra.mxu0 %v617
  %1970 = vmatprep.subr.mxu0 %v620
  %1971 = vmatpush1.msra.mxu0 %v619
  %1972 = vmatprep.subr.mxu0 %v622
  %1973 = vmatpush1.msra.mxu0 %v621
  %1974 = vmatprep.subr.mxu0 %v624
  %1975 = vmatpush1.msra.mxu0 %v623
  %1976 = vmatprep.subr.mxu0 %v626
  %1977 = vmatpush1.msra.mxu0 %v625
  %1978 = vmatprep.subr.mxu0 %v628
  %1979 = vmatpush1.msra.mxu0 %v627
  %1980 = vmatprep.subr.mxu0 %v630
  %1981 = vmatpush1.msra.mxu0 %v629
  %1982 = vmatprep.subr.mxu0 %v632
  %1983 = vmatpush1.msra.mxu0 %v631
  %1984 = vmatprep.subr.mxu0 %v634
  %1985 = vmatpush1.msra.mxu0 %v633
  %1986 = vmatprep.subr.mxu0 %v636
  %1987 = vmatpush1.msra.mxu0 %v635
  %1988 = vmatprep.subr.mxu0 %v638
  %1989 = vmatpush1.msra.mxu0 %v637
  %1990 = vmatprep.subr.mxu0 %v640
  %1991 = vmatpush1.msra.mxu0 %v639
  %1992 = vmatprep.subr.mxu0 %v642
  %1993 = vmatpush1.msra.mxu0 %v641
  %1994 = vmatprep.mubr.f32.mxu0 %v1287
  %1995 = vmatmul.mubr.f32.gmra.mrb[0].mxu0 %v1255
  %v1996 = vpop.f32.mrb[0].mxu0
  %v1997 = vadd.f32 %v1836, %v1996
  %v1998 = vpop.f32.mrb[0].mxu0
  %v1999 = vadd.f32 %v1838, %v1998
  %2000 = vmatprep.mubr.f32.mxu0 %v1288
  %2001 = vmatmul.mubr.f32.gmra.mrb[0].mxu0 %v1256
  %v2002 = vpop.f32.mrb[0].mxu0
  %v2003 = vadd.f32 %v1842, %v2002
  %v2004 = vpop.f32.mrb[0].mxu0
  %v2005 = vadd.f32 %v1844, %v2004
  %2006 = vmatprep.mubr.f32.mxu0 %v1289
  %2007 = vmatmul.mubr.f32.gmra.mrb[0].mxu0 %v1257
  %v2008 = vpop.f32.mrb[0].mxu0
  %v2009 = vadd.f32 %v1848, %v2008
  %v2010 = vpop.f32.mrb[0].mxu0
  %v2011 = vadd.f32 %v1850, %v2010
  %2012 = vmatprep.mubr.f32.mxu0 %v1290
  %2013 = vmatmul.mubr.f32.gmra.mrb[0].mxu0 %v1258
  %v2014 = vpop.f32.mrb[0].mxu0
  %v2015 = vadd.f32 %v1854, %v2014
  %v2016 = vpop.f32.mrb[0].mxu0
  %v2017 = vadd.f32 %v1856, %v2016
  %2018 = vmatprep.mubr.f32.mxu0 %v1291
  %2019 = vmatmul.mubr.f32.gmra.mrb[0].mxu0 %v1259
  %v2020 = vpop.f32.mrb[0].mxu0
  %v2021 = vadd.f32 %v1860, %v2020
  %v2022 = vpop.f32.mrb[0].mxu0
  %v2023 = vadd.f32 %v1862, %v2022
  %2024 = vmatprep.mubr.f32.mxu0 %v1292
  %2025 = vmatmul.mubr.f32.gmra.mrb[0].mxu0 %v1260
  %v2026 = vpop.f32.mrb[0].mxu0
  %v2027 = vadd.f32 %v1866, %v2026
  %v2028 = vpop.f32.mrb[0].mxu0
  %v2029 = vadd.f32 %v1868, %v2028
  %2030 = vmatprep.mubr.f32.mxu0 %v1293
  %2031 = vmatmul.mubr.f32.gmra.mrb[0].mxu0 %v1261
  %v2032 = vpop.f32.mrb[0].mxu0
  %v2033 = vadd.f32 %v1872, %v2032
  %v2034 = vpop.f32.mrb[0].mxu0
  %v2035 = vadd.f32 %v1874, %v2034
  %2036 = vmatprep.mubr.f32.mxu0 %v1294
  %2037 = vmatmul.mubr.f32.gmra.mrb[0].mxu0 %v1262
  %v2038 = vpop.f32.mrb[0].mxu0
  %v2039 = vadd.f32 %v1878, %v2038
  %v2040 = vpop.f32.mrb[0].mxu0
  %v2041 = vadd.f32 %v1880, %v2040
  %2042 = vmatprep.mubr.f32.mxu0 %v1295
  %2043 = vmatmul.mubr.f32.gmra.mrb[0].mxu0 %v1263
  %v2044 = vpop.f32.mrb[0].mxu0
  %v2045 = vadd.f32 %v1884, %v2044
  %v2046 = vpop.f32.mrb[0].mxu0
  %v2047 = vadd.f32 %v1886, %v2046
  %2048 = vmatprep.mubr.f32.mxu0 %v1296
  %2049 = vmatmul.mubr.f32.gmra.mrb[0].mxu0 %v1264
  %v2050 = vpop.f32.mrb[0].mxu0
  %v2051 = vadd.f32 %v1890, %v2050
  %v2052 = vpop.f32.mrb[0].mxu0
  %v2053 = vadd.f32 %v1892, %v2052
  %2054 = vmatprep.mubr.f32.mxu0 %v1297
  %2055 = vmatmul.mubr.f32.gmra.mrb[0].mxu0 %v1265
  %v2056 = vpop.f32.mrb[0].mxu0
  %v2057 = vadd.f32 %v1896, %v2056
  %v2058 = vpop.f32.mrb[0].mxu0
  %v2059 = vadd.f32 %v1898, %v2058
  %2060 = vmatprep.mubr.f32.mxu0 %v1298
  %2061 = vmatmul.mubr.f32.gmra.mrb[0].mxu0 %v1266
  %v2062 = vpop.f32.mrb[0].mxu0
  %v2063 = vadd.f32 %v1902, %v2062
  %v2064 = vpop.f32.mrb[0].mxu0
  %v2065 = vadd.f32 %v1904, %v2064
  %2066 = vmatprep.mubr.f32.mxu0 %v1299
  %2067 = vmatmul.mubr.f32.gmra.mrb[0].mxu0 %v1267
  %v2068 = vpop.f32.mrb[0].mxu0
  %v2069 = vadd.f32 %v1908, %v2068
  %v2070 = vpop.f32.mrb[0].mxu0
  %v2071 = vadd.f32 %v1910, %v2070
  %2072 = vmatprep.mubr.f32.mxu0 %v1300
  %2073 = vmatmul.mubr.f32.gmra.mrb[0].mxu0 %v1268
  %v2074 = vpop.f32.mrb[0].mxu0
  %v2075 = vadd.f32 %v1914, %v2074
  %v2076 = vpop.f32.mrb[0].mxu0
  %v2077 = vadd.f32 %v1916, %v2076
  %2078 = vmatprep.mubr.f32.mxu0 %v1301
  %2079 = vmatmul.mubr.f32.gmra.mrb[0].mxu0 %v1269
  %v2080 = vpop.f32.mrb[0].mxu0
  %v2081 = vadd.f32 %v1920, %v2080
  %v2082 = vpop.f32.mrb[0].mxu0
  %v2083 = vadd.f32 %v1922, %v2082
  %2084 = vmatprep.mubr.f32.mxu0 %v1302
  %2085 = vmatmul.mubr.f32.gmra.mrb[0].mxu0 %v1270
  %v2086 = vpop.f32.mrb[0].mxu0
  %v2087 = vadd.f32 %v1926, %v2086
  %v2088 = vpop.f32.mrb[0].mxu0
  %v2089 = vadd.f32 %v1928, %v2088
  %2090 = vdwg.mxu0
  %2091 = vmatprep.subr.mxu0 %v644
  %2092 = vmatpush1.msra.mxu0 %v643
  %2093 = vmatprep.subr.mxu0 %v646
  %2094 = vmatpush1.msra.mxu0 %v645
  %2095 = vmatprep.subr.mxu0 %v648
  %2096 = vmatpush1.msra.mxu0 %v647
  %2097 = vmatprep.subr.mxu0 %v650
  %2098 = vmatpush1.msra.mxu0 %v649
  %2099 = vmatprep.subr.mxu0 %v652
  %2100 = vmatpush1.msra.mxu0 %v651
  %2101 = vmatprep.subr.mxu0 %v654
  %2102 = vmatpush1.msra.mxu0 %v653
  %2103 = vmatprep.subr.mxu0 %v656
  %2104 = vmatpush1.msra.mxu0 %v655
  %2105 = vmatprep.subr.mxu0 %v658
  %2106 = vmatpush1.msra.mxu0 %v657
  %2107 = vmatprep.subr.mxu0 %v660
  %2108 = vmatpush1.msra.mxu0 %v659
  %2109 = vmatprep.subr.mxu0 %v662
  %2110 = vmatpush1.msra.mxu0 %v661
  %2111 = vmatprep.subr.mxu0 %v664
  %2112 = vmatpush1.msra.mxu0 %v663
  %2113 = vmatprep.subr.mxu0 %v666
  %2114 = vmatpush1.msra.mxu0 %v665
  %2115 = vmatprep.subr.mxu0 %v668
  %2116 = vmatpush1.msra.mxu0 %v667
  %2117 = vmatprep.subr.mxu0 %v670
  %2118 = vmatpush1.msra.mxu0 %v669
  %2119 = vmatprep.subr.mxu0 %v672
  %2120 = vmatpush1.msra.mxu0 %v671
  %2121 = vmatprep.subr.mxu0 %v674
  %2122 = vmatpush1.msra.mxu0 %v673
  %2123 = vmatprep.subr.mxu0 %v676
  %2124 = vmatpush1.msra.mxu0 %v675
  %2125 = vmatprep.subr.mxu0 %v678
  %2126 = vmatpush1.msra.mxu0 %v677
  %2127 = vmatprep.subr.mxu0 %v680
  %2128 = vmatpush1.msra.mxu0 %v679
  %2129 = vmatprep.subr.mxu0 %v682
  %2130 = vmatpush1.msra.mxu0 %v681
  %2131 = vmatprep.subr.mxu0 %v684
  %2132 = vmatpush1.msra.mxu0 %v683
  %2133 = vmatprep.subr.mxu0 %v686
  %2134 = vmatpush1.msra.mxu0 %v685
  %2135 = vmatprep.subr.mxu0 %v688
  %2136 = vmatpush1.msra.mxu0 %v687
  %2137 = vmatprep.subr.mxu0 %v690
  %2138 = vmatpush1.msra.mxu0 %v689
  %2139 = vmatprep.subr.mxu0 %v692
  %2140 = vmatpush1.msra.mxu0 %v691
  %2141 = vmatprep.subr.mxu0 %v694
  %2142 = vmatpush1.msra.mxu0 %v693
  %2143 = vmatprep.subr.mxu0 %v696
  %2144 = vmatpush1.msra.mxu0 %v695
  %2145 = vmatprep.subr.mxu0 %v698
  %2146 = vmatpush1.msra.mxu0 %v697
  %2147 = vmatprep.subr.mxu0 %v700
  %2148 = vmatpush1.msra.mxu0 %v699
  %2149 = vmatprep.subr.mxu0 %v702
  %2150 = vmatpush1.msra.mxu0 %v701
  %2151 = vmatprep.subr.mxu0 %v704
  %2152 = vmatpush1.msra.mxu0 %v703
  %2153 = vmatprep.subr.mxu0 %v706
  %2154 = vmatpush1.msra.mxu0 %v705
  %2155 = vmatprep.mubr.f32.mxu0 %v1351
  %2156 = vmatmul.mubr.f32.gmra.mrb[0].mxu0 %v1319
  %v2157 = vpop.f32.mrb[0].mxu0
  %v2158 = vadd.f32 %v1997, %v2157
  %v2159 = vpop.f32.mrb[0].mxu0
  %v2160 = vadd.f32 %v1999, %v2159
  %2161 = vmatprep.mubr.f32.mxu0 %v1352
  %2162 = vmatmul.mubr.f32.gmra.mrb[0].mxu0 %v1320
  %v2163 = vpop.f32.mrb[0].mxu0
  %v2164 = vadd.f32 %v2003, %v2163
  %v2165 = vpop.f32.mrb[0].mxu0
  %v2166 = vadd.f32 %v2005, %v2165
  %2167 = vmatprep.mubr.f32.mxu0 %v1353
  %2168 = vmatmul.mubr.f32.gmra.mrb[0].mxu0 %v1321
  %v2169 = vpop.f32.mrb[0].mxu0
  %v2170 = vadd.f32 %v2009, %v2169
  %v2171 = vpop.f32.mrb[0].mxu0
  %v2172 = vadd.f32 %v2011, %v2171
  %2173 = vmatprep.mubr.f32.mxu0 %v1354
  %2174 = vmatmul.mubr.f32.gmra.mrb[0].mxu0 %v1322
  %v2175 = vpop.f32.mrb[0].mxu0
  %v2176 = vadd.f32 %v2015, %v2175
  %v2177 = vpop.f32.mrb[0].mxu0
  %v2178 = vadd.f32 %v2017, %v2177
  %2179 = vmatprep.mubr.f32.mxu0 %v1355
  %2180 = vmatmul.mubr.f32.gmra.mrb[0].mxu0 %v1323
  %v2181 = vpop.f32.mrb[0].mxu0
  %v2182 = vadd.f32 %v2021, %v2181
  %v2183 = vpop.f32.mrb[0].mxu0
  %v2184 = vadd.f32 %v2023, %v2183
  %2185 = vmatprep.mubr.f32.mxu0 %v1356
  %2186 = vmatmul.mubr.f32.gmra.mrb[0].mxu0 %v1324
  %v2187 = vpop.f32.mrb[0].mxu0
  %v2188 = vadd.f32 %v2027, %v2187
  %v2189 = vpop.f32.mrb[0].mxu0
  %v2190 = vadd.f32 %v2029, %v2189
  %2191 = vmatprep.mubr.f32.mxu0 %v1357
  %2192 = vmatmul.mubr.f32.gmra.mrb[0].mxu0 %v1325
  %v2193 = vpop.f32.mrb[0].mxu0
  %v2194 = vadd.f32 %v2033, %v2193
  %v2195 = vpop.f32.mrb[0].mxu0
  %v2196 = vadd.f32 %v2035, %v2195
  %2197 = vmatprep.mubr.f32.mxu0 %v1358
  %2198 = vmatmul.mubr.f32.gmra.mrb[0].mxu0 %v1326
  %v2199 = vpop.f32.mrb[0].mxu0
  %v2200 = vadd.f32 %v2039, %v2199
  %v2201 = vpop.f32.mrb[0].mxu0
  %v2202 = vadd.f32 %v2041, %v2201
  %2203 = vmatprep.mubr.f32.mxu0 %v1359
  %2204 = vmatmul.mubr.f32.gmra.mrb[0].mxu0 %v1327
  %v2205 = vpop.f32.mrb[0].mxu0
  %v2206 = vadd.f32 %v2045, %v2205
  %v2207 = vpop.f32.mrb[0].mxu0
  %v2208 = vadd.f32 %v2047, %v2207
  %2209 = vmatprep.mubr.f32.mxu0 %v1360
  %2210 = vmatmul.mubr.f32.gmra.mrb[0].mxu0 %v1328
  %v2211 = vpop.f32.mrb[0].mxu0
  %v2212 = vadd.f32 %v2051, %v2211
  %v2213 = vpop.f32.mrb[0].mxu0
  %v2214 = vadd.f32 %v2053, %v2213
  %2215 = vmatprep.mubr.f32.mxu0 %v1361
  %2216 = vmatmul.mubr.f32.gmra.mrb[0].mxu0 %v1329
  %v2217 = vpop.f32.mrb[0].mxu0
  %v2218 = vadd.f32 %v2057, %v2217
  %v2219 = vpop.f32.mrb[0].mxu0
  %v2220 = vadd.f32 %v2059, %v2219
  %2221 = vmatprep.mubr.f32.mxu0 %v1362
  %2222 = vmatmul.mubr.f32.gmra.mrb[0].mxu0 %v1330
  %v2223 = vpop.f32.mrb[0].mxu0
  %v2224 = vadd.f32 %v2063, %v2223
  %v2225 = vpop.f32.mrb[0].mxu0
  %v2226 = vadd.f32 %v2065, %v2225
  %2227 = vmatprep.mubr.f32.mxu0 %v1363
  %2228 = vmatmul.mubr.f32.gmra.mrb[0].mxu0 %v1331
  %v2229 = vpop.f32.mrb[0].mxu0
  %v2230 = vadd.f32 %v2069, %v2229
  %v2231 = vpop.f32.mrb[0].mxu0
  %v2232 = vadd.f32 %v2071, %v2231
  %2233 = vmatprep.mubr.f32.mxu0 %v1364
  %2234 = vmatmul.mubr.f32.gmra.mrb[0].mxu0 %v1332
  %v2235 = vpop.f32.mrb[0].mxu0
  %v2236 = vadd.f32 %v2075, %v2235
  %v2237 = vpop.f32.mrb[0].mxu0
  %v2238 = vadd.f32 %v2077, %v2237
  %2239 = vmatprep.mubr.f32.mxu0 %v1365
  %2240 = vmatmul.mubr.f32.gmra.mrb[0].mxu0 %v1333
  %v2241 = vpop.f32.mrb[0].mxu0
  %v2242 = vadd.f32 %v2081, %v2241
  %v2243 = vpop.f32.mrb[0].mxu0
  %v2244 = vadd.f32 %v2083, %v2243
  %2245 = vmatprep.mubr.f32.mxu0 %v1366
  %2246 = vmatmul.mubr.f32.gmra.mrb[0].mxu0 %v1334
  %v2247 = vpop.f32.mrb[0].mxu0
  %v2248 = vadd.f32 %v2087, %v2247
  %v2249 = vpop.f32.mrb[0].mxu0
  %v2250 = vadd.f32 %v2089, %v2249
  %2251 = vdwg.mxu0
  %2252 = vmatprep.subr.mxu0 %v708
  %2253 = vmatpush1.msra.mxu0 %v707
  %2254 = vmatprep.subr.mxu0 %v710
  %2255 = vmatpush1.msra.mxu0 %v709
  %2256 = vmatprep.subr.mxu0 %v712
  %2257 = vmatpush1.msra.mxu0 %v711
  %2258 = vmatprep.subr.mxu0 %v714
  %2259 = vmatpush1.msra.mxu0 %v713
  %2260 = vmatprep.subr.mxu0 %v716
  %2261 = vmatpush1.msra.mxu0 %v715
  %2262 = vmatprep.subr.mxu0 %v718
  %2263 = vmatpush1.msra.mxu0 %v717
  %2264 = vmatprep.subr.mxu0 %v720
  %2265 = vmatpush1.msra.mxu0 %v719
  %2266 = vmatprep.subr.mxu0 %v722
  %2267 = vmatpush1.msra.mxu0 %v721
  %2268 = vmatprep.subr.mxu0 %v724
  %2269 = vmatpush1.msra.mxu0 %v723
  %2270 = vmatprep.subr.mxu0 %v726
  %2271 = vmatpush1.msra.mxu0 %v725
  %2272 = vmatprep.subr.mxu0 %v728
  %2273 = vmatpush1.msra.mxu0 %v727
  %2274 = vmatprep.subr.mxu0 %v730
  %2275 = vmatpush1.msra.mxu0 %v729
  %2276 = vmatprep.subr.mxu0 %v732
  %2277 = vmatpush1.msra.mxu0 %v731
  %2278 = vmatprep.subr.mxu0 %v734
  %2279 = vmatpush1.msra.mxu0 %v733
  %2280 = vmatprep.subr.mxu0 %v736
  %2281 = vmatpush1.msra.mxu0 %v735
  %2282 = vmatprep.subr.mxu0 %v738
  %2283 = vmatpush1.msra.mxu0 %v737
  %2284 = vmatprep.subr.mxu0 %v740
  %2285 = vmatpush1.msra.mxu0 %v739
  %2286 = vmatprep.subr.mxu0 %v742
  %2287 = vmatpush1.msra.mxu0 %v741
  %2288 = vmatprep.subr.mxu0 %v744
  %2289 = vmatpush1.msra.mxu0 %v743
  %2290 = vmatprep.subr.mxu0 %v746
  %2291 = vmatpush1.msra.mxu0 %v745
  %2292 = vmatprep.subr.mxu0 %v748
  %2293 = vmatpush1.msra.mxu0 %v747
  %2294 = vmatprep.subr.mxu0 %v750
  %2295 = vmatpush1.msra.mxu0 %v749
  %2296 = vmatprep.subr.mxu0 %v752
  %2297 = vmatpush1.msra.mxu0 %v751
  %2298 = vmatprep.subr.mxu0 %v754
  %2299 = vmatpush1.msra.mxu0 %v753
  %2300 = vmatprep.subr.mxu0 %v756
  %2301 = vmatpush1.msra.mxu0 %v755
  %2302 = vmatprep.subr.mxu0 %v758
  %2303 = vmatpush1.msra.mxu0 %v757
  %2304 = vmatprep.subr.mxu0 %v760
  %2305 = vmatpush1.msra.mxu0 %v759
  %2306 = vmatprep.subr.mxu0 %v762
  %2307 = vmatpush1.msra.mxu0 %v761
  %2308 = vmatprep.subr.mxu0 %v764
  %2309 = vmatpush1.msra.mxu0 %v763
  %2310 = vmatprep.subr.mxu0 %v766
  %2311 = vmatpush1.msra.mxu0 %v765
  %2312 = vmatprep.subr.mxu0 %v768
  %2313 = vmatpush1.msra.mxu0 %v767
  %2314 = vmatprep.subr.mxu0 %v770
  %2315 = vmatpush1.msra.mxu0 %v769
  %2316 = vmatprep.mubr.f32.mxu0 %v1415
  %2317 = vmatmul.mubr.f32.gmra.mrb[0].mxu0 %v1383
  %v2318 = vpop.f32.mrb[0].mxu0
  %v2319 = vadd.f32 %v2158, %v2318
  %v2320 = vpop.f32.mrb[0].mxu0
  %v2321 = vadd.f32 %v2160, %v2320
  %2322 = vmatprep.mubr.f32.mxu0 %v1416
  %2323 = vmatmul.mubr.f32.gmra.mrb[0].mxu0 %v1384
  %v2324 = vpop.f32.mrb[0].mxu0
  %v2325 = vadd.f32 %v2164, %v2324
  %v2326 = vpop.f32.mrb[0].mxu0
  %v2327 = vadd.f32 %v2166, %v2326
  %2328 = vmatprep.mubr.f32.mxu0 %v1417
  %2329 = vmatmul.mubr.f32.gmra.mrb[0].mxu0 %v1385
  %v2330 = vpop.f32.mrb[0].mxu0
  %v2331 = vadd.f32 %v2170, %v2330
  %v2332 = vpop.f32.mrb[0].mxu0
  %v2333 = vadd.f32 %v2172, %v2332
  %2334 = vmatprep.mubr.f32.mxu0 %v1418
  %2335 = vmatmul.mubr.f32.gmra.mrb[0].mxu0 %v1386
  %v2336 = vpop.f32.mrb[0].mxu0
  %v2337 = vadd.f32 %v2176, %v2336
  %v2338 = vpop.f32.mrb[0].mxu0
  %v2339 = vadd.f32 %v2178, %v2338
  %2340 = vmatprep.mubr.f32.mxu0 %v1419
  %2341 = vmatmul.mubr.f32.gmra.mrb[0].mxu0 %v1387
  %v2342 = vpop.f32.mrb[0].mxu0
  %v2343 = vadd.f32 %v2182, %v2342
  %v2344 = vpop.f32.mrb[0].mxu0
  %v2345 = vadd.f32 %v2184, %v2344
  %2346 = vmatprep.mubr.f32.mxu0 %v1420
  %2347 = vmatmul.mubr.f32.gmra.mrb[0].mxu0 %v1388
  %v2348 = vpop.f32.mrb[0].mxu0
  %v2349 = vadd.f32 %v2188, %v2348
  %v2350 = vpop.f32.mrb[0].mxu0
  %v2351 = vadd.f32 %v2190, %v2350
  %2352 = vmatprep.mubr.f32.mxu0 %v1421
  %2353 = vmatmul.mubr.f32.gmra.mrb[0].mxu0 %v1389
  %v2354 = vpop.f32.mrb[0].mxu0
  %v2355 = vadd.f32 %v2194, %v2354
  %v2356 = vpop.f32.mrb[0].mxu0
  %v2357 = vadd.f32 %v2196, %v2356
  %2358 = vmatprep.mubr.f32.mxu0 %v1422
  %2359 = vmatmul.mubr.f32.gmra.mrb[0].mxu0 %v1390
  %v2360 = vpop.f32.mrb[0].mxu0
  %v2361 = vadd.f32 %v2200, %v2360
  %v2362 = vpop.f32.mrb[0].mxu0
  %v2363 = vadd.f32 %v2202, %v2362
  %2364 = vmatprep.mubr.f32.mxu0 %v1423
  %2365 = vmatmul.mubr.f32.gmra.mrb[0].mxu0 %v1391
  %v2366 = vpop.f32.mrb[0].mxu0
  %v2367 = vadd.f32 %v2206, %v2366
  %v2368 = vpop.f32.mrb[0].mxu0
  %v2369 = vadd.f32 %v2208, %v2368
  %2370 = vmatprep.mubr.f32.mxu0 %v1424
  %2371 = vmatmul.mubr.f32.gmra.mrb[0].mxu0 %v1392
  %v2372 = vpop.f32.mrb[0].mxu0
  %v2373 = vadd.f32 %v2212, %v2372
  %v2374 = vpop.f32.mrb[0].mxu0
  %v2375 = vadd.f32 %v2214, %v2374
  %2376 = vmatprep.mubr.f32.mxu0 %v1425
  %2377 = vmatmul.mubr.f32.gmra.mrb[0].mxu0 %v1393
  %v2378 = vpop.f32.mrb[0].mxu0
  %v2379 = vadd.f32 %v2218, %v2378
  %v2380 = vpop.f32.mrb[0].mxu0
  %v2381 = vadd.f32 %v2220, %v2380
  %2382 = vmatprep.mubr.f32.mxu0 %v1426
  %2383 = vmatmul.mubr.f32.gmra.mrb[0].mxu0 %v1394
  %v2384 = vpop.f32.mrb[0].mxu0
  %v2385 = vadd.f32 %v2224, %v2384
  %v2386 = vpop.f32.mrb[0].mxu0
  %v2387 = vadd.f32 %v2226, %v2386
  %2388 = vmatprep.mubr.f32.mxu0 %v1427
  %2389 = vmatmul.mubr.f32.gmra.mrb[0].mxu0 %v1395
  %v2390 = vpop.f32.mrb[0].mxu0
  %v2391 = vadd.f32 %v2230, %v2390
  %v2392 = vpop.f32.mrb[0].mxu0
  %v2393 = vadd.f32 %v2232, %v2392
  %2394 = vmatprep.mubr.f32.mxu0 %v1428
  %2395 = vmatmul.mubr.f32.gmra.mrb[0].mxu0 %v1396
  %v2396 = vpop.f32.mrb[0].mxu0
  %v2397 = vadd.f32 %v2236, %v2396
  %v2398 = vpop.f32.mrb[0].mxu0
  %v2399 = vadd.f32 %v2238, %v2398
  %2400 = vmatprep.mubr.f32.mxu0 %v1429
  %2401 = vmatmul.mubr.f32.gmra.mrb[0].mxu0 %v1397
  %v2402 = vpop.f32.mrb[0].mxu0
  %v2403 = vadd.f32 %v2242, %v2402
  %v2404 = vpop.f32.mrb[0].mxu0
  %v2405 = vadd.f32 %v2244, %v2404
  %2406 = vmatprep.mubr.f32.mxu0 %v1430
  %2407 = vmatmul.mubr.f32.gmra.mrb[0].mxu0 %v1398
  %v2408 = vpop.f32.mrb[0].mxu0
  %v2409 = vadd.f32 %v2248, %v2408
  %v2410 = vpop.f32.mrb[0].mxu0
  %v2411 = vadd.f32 %v2250, %v2410
  %2412 = vdwg.mxu0
  %2413 = vmatprep.subr.mxu0 %v772
  %2414 = vmatpush1.msra.mxu0 %v771
  %2415 = vmatprep.subr.mxu0 %v774
  %2416 = vmatpush1.msra.mxu0 %v773
  %2417 = vmatprep.subr.mxu0 %v776
  %2418 = vmatpush1.msra.mxu0 %v775
  %2419 = vmatprep.subr.mxu0 %v778
  %2420 = vmatpush1.msra.mxu0 %v777
  %2421 = vmatprep.subr.mxu0 %v780
  %2422 = vmatpush1.msra.mxu0 %v779
  %2423 = vmatprep.subr.mxu0 %v782
  %2424 = vmatpush1.msra.mxu0 %v781
  %2425 = vmatprep.subr.mxu0 %v784
  %2426 = vmatpush1.msra.mxu0 %v783
  %2427 = vmatprep.subr.mxu0 %v786
  %2428 = vmatpush1.msra.mxu0 %v785
  %2429 = vmatprep.subr.mxu0 %v788
  %2430 = vmatpush1.msra.mxu0 %v787
  %2431 = vmatprep.subr.mxu0 %v790
  %2432 = vmatpush1.msra.mxu0 %v789
  %2433 = vmatprep.subr.mxu0 %v792
  %2434 = vmatpush1.msra.mxu0 %v791
  %2435 = vmatprep.subr.mxu0 %v794
  %2436 = vmatpush1.msra.mxu0 %v793
  %2437 = vmatprep.subr.mxu0 %v796
  %2438 = vmatpush1.msra.mxu0 %v795
  %2439 = vmatprep.subr.mxu0 %v798
  %2440 = vmatpush1.msra.mxu0 %v797
  %2441 = vmatprep.subr.mxu0 %v800
  %2442 = vmatpush1.msra.mxu0 %v799
  %2443 = vmatprep.subr.mxu0 %v802
  %2444 = vmatpush1.msra.mxu0 %v801
  %2445 = vmatprep.subr.mxu0 %v804
  %2446 = vmatpush1.msra.mxu0 %v803
  %2447 = vmatprep.subr.mxu0 %v806
  %2448 = vmatpush1.msra.mxu0 %v805
  %2449 = vmatprep.subr.mxu0 %v808
  %2450 = vmatpush1.msra.mxu0 %v807
  %2451 = vmatprep.subr.mxu0 %v810
  %2452 = vmatpush1.msra.mxu0 %v809
  %2453 = vmatprep.subr.mxu0 %v812
  %2454 = vmatpush1.msra.mxu0 %v811
  %2455 = vmatprep.subr.mxu0 %v814
  %2456 = vmatpush1.msra.mxu0 %v813
  %2457 = vmatprep.subr.mxu0 %v816
  %2458 = vmatpush1.msra.mxu0 %v815
  %2459 = vmatprep.subr.mxu0 %v818
  %2460 = vmatpush1.msra.mxu0 %v817
  %2461 = vmatprep.subr.mxu0 %v820
  %2462 = vmatpush1.msra.mxu0 %v819
  %2463 = vmatprep.subr.mxu0 %v822
  %2464 = vmatpush1.msra.mxu0 %v821
  %2465 = vmatprep.subr.mxu0 %v824
  %2466 = vmatpush1.msra.mxu0 %v823
  %2467 = vmatprep.subr.mxu0 %v826
  %2468 = vmatpush1.msra.mxu0 %v825
  %2469 = vmatprep.subr.mxu0 %v828
  %2470 = vmatpush1.msra.mxu0 %v827
  %2471 = vmatprep.subr.mxu0 %v830
  %2472 = vmatpush1.msra.mxu0 %v829
  %2473 = vmatprep.subr.mxu0 %v832
  %2474 = vmatpush1.msra.mxu0 %v831
  %2475 = vmatprep.subr.mxu0 %v834
  %2476 = vmatpush1.msra.mxu0 %v833
  %2477 = vmatprep.mubr.f32.mxu0 %v1479
  %2478 = vmatmul.mubr.f32.gmra.mrb[0].mxu0 %v1447
  %v2479 = vpop.f32.mrb[0].mxu0
  %v2480 = vadd.f32 %v2319, %v2479
  %v2481 = vpop.f32.mrb[0].mxu0
  %v2482 = vadd.f32 %v2321, %v2481
  %2483 = vmatprep.mubr.f32.mxu0 %v1480
  %2484 = vmatmul.mubr.f32.gmra.mrb[0].mxu0 %v1448
  %v2485 = vpop.f32.mrb[0].mxu0
  %v2486 = vadd.f32 %v2325, %v2485
  %v2487 = vpop.f32.mrb[0].mxu0
  %v2488 = vadd.f32 %v2327, %v2487
  %2489 = vmatprep.mubr.f32.mxu0 %v1481
  %2490 = vmatmul.mubr.f32.gmra.mrb[0].mxu0 %v1449
  %v2491 = vpop.f32.mrb[0].mxu0
  %v2492 = vadd.f32 %v2331, %v2491
  %v2493 = vpop.f32.mrb[0].mxu0
  %v2494 = vadd.f32 %v2333, %v2493
  %2495 = vmatprep.mubr.f32.mxu0 %v1482
  %2496 = vmatmul.mubr.f32.gmra.mrb[0].mxu0 %v1450
  %v2497 = vpop.f32.mrb[0].mxu0
  %v2498 = vadd.f32 %v2337, %v2497
  %v2499 = vpop.f32.mrb[0].mxu0
  %v2500 = vadd.f32 %v2339, %v2499
  %2501 = vmatprep.mubr.f32.mxu0 %v1483
  %2502 = vmatmul.mubr.f32.gmra.mrb[0].mxu0 %v1451
  %v2503 = vpop.f32.mrb[0].mxu0
  %v2504 = vadd.f32 %v2343, %v2503
  %v2505 = vpop.f32.mrb[0].mxu0
  %v2506 = vadd.f32 %v2345, %v2505
  %2507 = vmatprep.mubr.f32.mxu0 %v1484
  %2508 = vmatmul.mubr.f32.gmra.mrb[0].mxu0 %v1452
  %v2509 = vpop.f32.mrb[0].mxu0
  %v2510 = vadd.f32 %v2349, %v2509
  %v2511 = vpop.f32.mrb[0].mxu0
  %v2512 = vadd.f32 %v2351, %v2511
  %2513 = vmatprep.mubr.f32.mxu0 %v1485
  %2514 = vmatmul.mubr.f32.gmra.mrb[0].mxu0 %v1453
  %v2515 = vpop.f32.mrb[0].mxu0
  %v2516 = vadd.f32 %v2355, %v2515
  %v2517 = vpop.f32.mrb[0].mxu0
  %v2518 = vadd.f32 %v2357, %v2517
  %2519 = vmatprep.mubr.f32.mxu0 %v1486
  %2520 = vmatmul.mubr.f32.gmra.mrb[0].mxu0 %v1454
  %v2521 = vpop.f32.mrb[0].mxu0
  %v2522 = vadd.f32 %v2361, %v2521
  %v2523 = vpop.f32.mrb[0].mxu0
  %v2524 = vadd.f32 %v2363, %v2523
  %2525 = vmatprep.mubr.f32.mxu0 %v1487
  %2526 = vmatmul.mubr.f32.gmra.mrb[0].mxu0 %v1455
  %v2527 = vpop.f32.mrb[0].mxu0
  %v2528 = vadd.f32 %v2367, %v2527
  %v2529 = vpop.f32.mrb[0].mxu0
  %v2530 = vadd.f32 %v2369, %v2529
  %2531 = vmatprep.mubr.f32.mxu0 %v1488
  %2532 = vmatmul.mubr.f32.gmra.mrb[0].mxu0 %v1456
  %v2533 = vpop.f32.mrb[0].mxu0
  %v2534 = vadd.f32 %v2373, %v2533
  %v2535 = vpop.f32.mrb[0].mxu0
  %v2536 = vadd.f32 %v2375, %v2535
  %2537 = vmatprep.mubr.f32.mxu0 %v1489
  %2538 = vmatmul.mubr.f32.gmra.mrb[0].mxu0 %v1457
  %v2539 = vpop.f32.mrb[0].mxu0
  %v2540 = vadd.f32 %v2379, %v2539
  %v2541 = vpop.f32.mrb[0].mxu0
  %v2542 = vadd.f32 %v2381, %v2541
  %2543 = vmatprep.mubr.f32.mxu0 %v1490
  %2544 = vmatmul.mubr.f32.gmra.mrb[0].mxu0 %v1458
  %v2545 = vpop.f32.mrb[0].mxu0
  %v2546 = vadd.f32 %v2385, %v2545
  %v2547 = vpop.f32.mrb[0].mxu0
  %v2548 = vadd.f32 %v2387, %v2547
  %2549 = vmatprep.mubr.f32.mxu0 %v1491
  %2550 = vmatmul.mubr.f32.gmra.mrb[0].mxu0 %v1459
  %v2551 = vpop.f32.mrb[0].mxu0
  %v2552 = vadd.f32 %v2391, %v2551
  %v2553 = vpop.f32.mrb[0].mxu0
  %v2554 = vadd.f32 %v2393, %v2553
  %2555 = vmatprep.mubr.f32.mxu0 %v1492
  %2556 = vmatmul.mubr.f32.gmra.mrb[0].mxu0 %v1460
  %v2557 = vpop.f32.mrb[0].mxu0
  %v2558 = vadd.f32 %v2397, %v2557
  %v2559 = vpop.f32.mrb[0].mxu0
  %v2560 = vadd.f32 %v2399, %v2559
  %2561 = vmatprep.mubr.f32.mxu0 %v1493
  %2562 = vmatmul.mubr.f32.gmra.mrb[0].mxu0 %v1461
  %v2563 = vpop.f32.mrb[0].mxu0
  %v2564 = vadd.f32 %v2403, %v2563
  %v2565 = vpop.f32.mrb[0].mxu0
  %v2566 = vadd.f32 %v2405, %v2565
  %2567 = vmatprep.mubr.f32.mxu0 %v1494
  %2568 = vmatmul.mubr.f32.gmra.mrb[0].mxu0 %v1462
  %v2569 = vpop.f32.mrb[0].mxu0
  %v2570 = vadd.f32 %v2409, %v2569
  %v2571 = vpop.f32.mrb[0].mxu0
  %v2572 = vadd.f32 %v2411, %v2571
  %2573 = vdwg.mxu0
  %2574 = vmatprep.subr.mxu0 %v836
  %2575 = vmatpush1.msra.mxu0 %v835
  %2576 = vmatprep.subr.mxu0 %v838
  %2577 = vmatpush1.msra.mxu0 %v837
  %2578 = vmatprep.subr.mxu0 %v840
  %2579 = vmatpush1.msra.mxu0 %v839
  %2580 = vmatprep.subr.mxu0 %v842
  %2581 = vmatpush1.msra.mxu0 %v841
  %2582 = vmatprep.subr.mxu0 %v844
  %2583 = vmatpush1.msra.mxu0 %v843
  %2584 = vmatprep.subr.mxu0 %v846
  %2585 = vmatpush1.msra.mxu0 %v845
  %2586 = vmatprep.subr.mxu0 %v848
  %2587 = vmatpush1.msra.mxu0 %v847
  %2588 = vmatprep.subr.mxu0 %v850
  %2589 = vmatpush1.msra.mxu0 %v849
  %2590 = vmatprep.subr.mxu0 %v852
  %2591 = vmatpush1.msra.mxu0 %v851
  %2592 = vmatprep.subr.mxu0 %v854
  %2593 = vmatpush1.msra.mxu0 %v853
  %2594 = vmatprep.subr.mxu0 %v856
  %2595 = vmatpush1.msra.mxu0 %v855
  %2596 = vmatprep.subr.mxu0 %v858
  %2597 = vmatpush1.msra.mxu0 %v857
  %2598 = vmatprep.subr.mxu0 %v860
  %2599 = vmatpush1.msra.mxu0 %v859
  %2600 = vmatprep.subr.mxu0 %v862
  %2601 = vmatpush1.msra.mxu0 %v861
  %2602 = vmatprep.subr.mxu0 %v864
  %2603 = vmatpush1.msra.mxu0 %v863
  %2604 = vmatprep.subr.mxu0 %v866
  %2605 = vmatpush1.msra.mxu0 %v865
  %2606 = vmatprep.subr.mxu0 %v868
  %2607 = vmatpush1.msra.mxu0 %v867
  %2608 = vmatprep.subr.mxu0 %v870
  %2609 = vmatpush1.msra.mxu0 %v869
  %2610 = vmatprep.subr.mxu0 %v872
  %2611 = vmatpush1.msra.mxu0 %v871
  %2612 = vmatprep.subr.mxu0 %v874
  %2613 = vmatpush1.msra.mxu0 %v873
  %2614 = vmatprep.subr.mxu0 %v876
  %2615 = vmatpush1.msra.mxu0 %v875
  %2616 = vmatprep.subr.mxu0 %v878
  %2617 = vmatpush1.msra.mxu0 %v877
  %2618 = vmatprep.subr.mxu0 %v880
  %2619 = vmatpush1.msra.mxu0 %v879
  %2620 = vmatprep.subr.mxu0 %v882
  %2621 = vmatpush1.msra.mxu0 %v881
  %2622 = vmatprep.subr.mxu0 %v884
  %2623 = vmatpush1.msra.mxu0 %v883
  %2624 = vmatprep.subr.mxu0 %v886
  %2625 = vmatpush1.msra.mxu0 %v885
  %2626 = vmatprep.subr.mxu0 %v888
  %2627 = vmatpush1.msra.mxu0 %v887
  %2628 = vmatprep.subr.mxu0 %v890
  %2629 = vmatpush1.msra.mxu0 %v889
  %2630 = vmatprep.subr.mxu0 0.0
  %2631 = vmatpush1.msra.mxu0 0.0
  %2632 = vmatprep.subr.mxu0 0.0
  %2633 = vmatpush1.msra.mxu0 0.0
  %2634 = vmatprep.subr.mxu0 0.0
  %2635 = vmatpush1.msra.mxu0 0.0
  %2636 = vmatprep.subr.mxu0 0.0
  %2637 = vmatpush1.msra.mxu0 0.0
  %2638 = vmatprep.mubr.f32.mxu0 %v1561
  %2639 = vmatmul.mubr.f32.gmra.mrb[0].mxu0 %v1511
  %v2640 = vpop.f32.mrb[0].mxu0
  %v2641 = vadd.f32 %v2480, %v2640
  %v2642 = vpop.f32.mrb[0].mxu0
  %v2643 = vadd.f32 %v2482, %v2642
  %2644 = vmatprep.mubr.f32.mxu0 %v1564
  %2645 = vmatmul.mubr.f32.gmra.mrb[0].mxu0 %v1512
  %v2646 = vpop.f32.mrb[0].mxu0
  %v2647 = vadd.f32 %v2486, %v2646
  %v2648 = vpop.f32.mrb[0].mxu0
  %v2649 = vadd.f32 %v2488, %v2648
  %2650 = vmatprep.mubr.f32.mxu0 %v1567
  %2651 = vmatmul.mubr.f32.gmra.mrb[0].mxu0 %v1513
  %v2652 = vpop.f32.mrb[0].mxu0
  %v2653 = vadd.f32 %v2492, %v2652
  %v2654 = vpop.f32.mrb[0].mxu0
  %v2655 = vadd.f32 %v2494, %v2654
  %2656 = vmatprep.mubr.f32.mxu0 %v1570
  %2657 = vmatmul.mubr.f32.gmra.mrb[0].mxu0 %v1514
  %v2658 = vpop.f32.mrb[0].mxu0
  %v2659 = vadd.f32 %v2498, %v2658
  %v2660 = vpop.f32.mrb[0].mxu0
  %v2661 = vadd.f32 %v2500, %v2660
  %2662 = vmatprep.mubr.f32.mxu0 %v1573
  %2663 = vmatmul.mubr.f32.gmra.mrb[0].mxu0 %v1515
  %v2664 = vpop.f32.mrb[0].mxu0
  %v2665 = vadd.f32 %v2504, %v2664
  %v2666 = vpop.f32.mrb[0].mxu0
  %v2667 = vadd.f32 %v2506, %v2666
  %2668 = vmatprep.mubr.f32.mxu0 %v1576
  %2669 = vmatmul.mubr.f32.gmra.mrb[0].mxu0 %v1516
  %v2670 = vpop.f32.mrb[0].mxu0
  %v2671 = vadd.f32 %v2510, %v2670
  %v2672 = vpop.f32.mrb[0].mxu0
  %v2673 = vadd.f32 %v2512, %v2672
  %2674 = vmatprep.mubr.f32.mxu0 %v1579
  %2675 = vmatmul.mubr.f32.gmra.mrb[0].mxu0 %v1517
  %v2676 = vpop.f32.mrb[0].mxu0
  %v2677 = vadd.f32 %v2516, %v2676
  %v2678 = vpop.f32.mrb[0].mxu0
  %v2679 = vadd.f32 %v2518, %v2678
  %2680 = vmatprep.mubr.f32.mxu0 %v1582
  %2681 = vmatmul.mubr.f32.gmra.mrb[0].mxu0 %v1518
  %v2682 = vpop.f32.mrb[0].mxu0
  %v2683 = vadd.f32 %v2522, %v2682
  %v2684 = vpop.f32.mrb[0].mxu0
  %v2685 = vadd.f32 %v2524, %v2684
  %2686 = vmatprep.mubr.f32.mxu0 %v1585
  %2687 = vmatmul.mubr.f32.gmra.mrb[0].mxu0 %v1519
  %v2688 = vpop.f32.mrb[0].mxu0
  %v2689 = vadd.f32 %v2528, %v2688
  %v2690 = vpop.f32.mrb[0].mxu0
  %v2691 = vadd.f32 %v2530, %v2690
  %2692 = vmatprep.mubr.f32.mxu0 %v1588
  %2693 = vmatmul.mubr.f32.gmra.mrb[0].mxu0 %v1520
  %v2694 = vpop.f32.mrb[0].mxu0
  %v2695 = vadd.f32 %v2534, %v2694
  %v2696 = vpop.f32.mrb[0].mxu0
  %v2697 = vadd.f32 %v2536, %v2696
  %2698 = vmatprep.mubr.f32.mxu0 %v1591
  %2699 = vmatmul.mubr.f32.gmra.mrb[0].mxu0 %v1521
  %v2700 = vpop.f32.mrb[0].mxu0
  %v2701 = vadd.f32 %v2540, %v2700
  %v2702 = vpop.f32.mrb[0].mxu0
  %v2703 = vadd.f32 %v2542, %v2702
  %2704 = vmatprep.mubr.f32.mxu0 %v1594
  %2705 = vmatmul.mubr.f32.gmra.mrb[0].mxu0 %v1522
  %v2706 = vpop.f32.mrb[0].mxu0
  %v2707 = vadd.f32 %v2546, %v2706
  %v2708 = vpop.f32.mrb[0].mxu0
  %v2709 = vadd.f32 %v2548, %v2708
  %2710 = vmatprep.mubr.f32.mxu0 %v1597
  %2711 = vmatmul.mubr.f32.gmra.mrb[0].mxu0 %v1523
  %v2712 = vpop.f32.mrb[0].mxu0
  %v2713 = vadd.f32 %v2552, %v2712
  %v2714 = vpop.f32.mrb[0].mxu0
  %v2715 = vadd.f32 %v2554, %v2714
  %2716 = vmatprep.mubr.f32.mxu0 %v1600
  %2717 = vmatmul.mubr.f32.gmra.mrb[0].mxu0 %v1524
  %v2718 = vpop.f32.mrb[0].mxu0
  %v2719 = vadd.f32 %v2558, %v2718
  %v2720 = vpop.f32.mrb[0].mxu0
  %v2721 = vadd.f32 %v2560, %v2720
  %2722 = vmatprep.mubr.f32.mxu0 %v1603
  %2723 = vmatmul.mubr.f32.gmra.mrb[0].mxu0 %v1525
  %v2724 = vpop.f32.mrb[0].mxu0
  %v2725 = vadd.f32 %v2564, %v2724
  %v2726 = vpop.f32.mrb[0].mxu0
  %v2727 = vadd.f32 %v2566, %v2726
  %2728 = vmatprep.mubr.f32.mxu0 %v1606
  %2729 = vmatmul.mubr.f32.gmra.mrb[0].mxu0 %v1526
  %v2730 = vpop.f32.mrb[0].mxu0
  %v2731 = vadd.f32 %v2570, %v2730
  %v2732 = vpop.f32.mrb[0].mxu0
  %v2733 = vadd.f32 %v2572, %v2732
  %2734 = vdwg.mxu0
  %2735 = vst [vmem:[%s2] sm:$0xff] %v2641
  %vm2736 = vcmask 556032
  %2737 = vst.msk [vmem:[%s2 + $0x8] sm:$0xff] %vm2736, %v2643
  %2738 = vst [vmem:[%s2 + $0x10] sm:$0xff] %v2647
  %2739 = vst.msk [vmem:[%s2 + $0x18] sm:$0xff] %vm2736, %v2649
  %2740 = vst [vmem:[%s2 + $0x20] sm:$0xff] %v2653
  %2741 = vst.msk [vmem:[%s2 + $0x28] sm:$0xff] %vm2736, %v2655
  %2742 = vst [vmem:[%s2 + $0x30] sm:$0xff] %v2659
  %2743 = vst.msk [vmem:[%s2 + $0x38] sm:$0xff] %vm2736, %v2661
  %2744 = vst [vmem:[%s2 + $0x40] sm:$0xff] %v2665
  %2745 = vst.msk [vmem:[%s2 + $0x48] sm:$0xff] %vm2736, %v2667
  %2746 = vst [vmem:[%s2 + $0x50] sm:$0xff] %v2671
  %2747 = vst.msk [vmem:[%s2 + $0x58] sm:$0xff] %vm2736, %v2673
  %2748 = vst [vmem:[%s2 + $0x60] sm:$0xff] %v2677
  %2749 = vst.msk [vmem:[%s2 + $0x68] sm:$0xff] %vm2736, %v2679
  %2750 = vst [vmem:[%s2 + $0x70] sm:$0xff] %v2683
  %2751 = vst.msk [vmem:[%s2 + $0x78] sm:$0xff] %vm2736, %v2685
  %2752 = vst [vmem:[%s2 + $0x80] sm:$0xff] %v2689
  %2753 = vst.msk [vmem:[%s2 + $0x88] sm:$0xff] %vm2736, %v2691
  %2754 = vst [vmem:[%s2 + $0x90] sm:$0xff] %v2695
  %2755 = vst.msk [vmem:[%s2 + $0x98] sm:$0xff] %vm2736, %v2697
  %2756 = vst [vmem:[%s2 + $0xa0] sm:$0xff] %v2701
  %2757 = vst.msk [vmem:[%s2 + $0xa8] sm:$0xff] %vm2736, %v2703
  %2758 = vst [vmem:[%s2 + $0xb0] sm:$0xff] %v2707
  %2759 = vst.msk [vmem:[%s2 + $0xb8] sm:$0xff] %vm2736, %v2709
  %2760 = vst [vmem:[%s2 + $0xc0] sm:$0xff] %v2713
  %2761 = vst.msk [vmem:[%s2 + $0xc8] sm:$0xff] %vm2736, %v2715
  %2762 = vst [vmem:[%s2 + $0xd0] sm:$0xff] %v2719
  %2763 = vst.msk [vmem:[%s2 + $0xd8] sm:$0xff] %vm2736, %v2721
  %2764 = vst [vmem:[%s2 + $0xe0] sm:$0xff] %v2725
  %2765 = vst.msk [vmem:[%s2 + $0xe8] sm:$0xff] %vm2736, %v2727
  %2766 = vst [vmem:[%s2 + $0xf0] sm:$0xff] %v2731
  %2767 = vst.msk [vmem:[%s2 + $0xf8] sm:$0xff] %vm2736, %v2733
  // Predicated region
  $region10: #{tpu_custom_call.1} parent=0 // pred_check
    _
  $region11: #{tpu_custom_call.1} parent=0 // pred_check_branch
    %2769 = sbr.rel (0) target = $region13
  $region12: #{tpu_custom_call.1} parent=0 // pred_region
    _
  $region13: #{tpu_custom_call.1} parent=0 // pred_fallthru
    _
  // Predicated region
  $region14: #{tpu_custom_call.1} parent=0 // pred_check
    _
  $region15: #{tpu_custom_call.1} parent=0 // pred_check_branch
    %2771 = sbr.rel (0) target = $region17
  $region16: #{tpu_custom_call.1} parent=0 // pred_region
    _
  $region17: #{tpu_custom_call.1} parent=0 // pred_fallthru
    _

</llo_original>
